<compile_context>
chip_gen: v5e
topology: v5e:2x2
jax: 0.10.0
libtpu: 0.0.40
codegen_flags: <defaults>
</compile_context>

<pallas_src>
import jax
import jax.numpy as jnp
from jax import lax
from jax.experimental import pallas as pl
from jax.experimental.pallas import tpu as pltpu


def _round_up(x, m):
    return ((x + m - 1) // m) * m


def lstm_kernel(gx_ref, w_hh_ref, w_fc_ref, b_fc_ref, out_ref,
                h_scr, c_scr, hall_scr):
    """One time-chunk of the LSTM recurrence + batched FC head.

    gx_ref   : (T, Bp, 4*Hp) f32  precomputed x @ W_ih^T + (b_ih + b_hh)
    w_hh_ref : (Hp, 4*Hp)    bf16 recurrent weights (gate-blocked, transposed)
    w_fc_ref : (Hp, Op)      bf16 FC-head weights (transposed)
    b_fc_ref : (1, Op)       f32
    out_ref  : (T, Bp, Op)   f32
    h_scr/c_scr : (Bp, Hp)   f32  state carried across time chunks
    hall_scr : (T, Bp, Hp)  bf16  per-step hidden states (feeds the FC head)
    """
    @pl.when(pl.program_id(0) == 0)
    def _():
        h_scr[...] = jnp.zeros_like(h_scr)
        c_scr[...] = jnp.zeros_like(c_scr)

    Bp, Hp = h_scr.shape
    T = gx_ref.shape[0]
    Op = out_ref.shape[2]

    def step(t, carry):
        h, c = carry
        # Recurrent matmul on the MXU (bf16 operands, f32 accumulation).
        gates = gx_ref[t] + jnp.dot(h.astype(jnp.bfloat16), w_hh_ref[...],
                                    preferred_element_type=jnp.float32)
        # Gate-blocked layout: each slice below is a whole 128-lane tile.
        i_g = jax.nn.sigmoid(gates[:, 0 * Hp:1 * Hp])
        f_g = jax.nn.sigmoid(gates[:, 1 * Hp:2 * Hp])
        g_g = jnp.tanh(gates[:, 2 * Hp:3 * Hp])
        o_g = jax.nn.sigmoid(gates[:, 3 * Hp:4 * Hp])
        c = f_g * c + i_g * g_g
        h = o_g * jnp.tanh(c)
        # Stash h for the FC head; keeps the serial chain h,c -> h,c only.
        hall_scr[t] = h.astype(jnp.bfloat16)
        return h, c

    h, c = lax.fori_loop(0, T, step, (h_scr[...], c_scr[...]), unroll=True)
    h_scr[...] = h
    c_scr[...] = c

    # FC head off the serial path: one big (T*Bp, Hp) @ (Hp, Op) MXU matmul
    # followed by a single lane-dense slab store.
    h_all = hall_scr[...].reshape(T * Bp, Hp)
    out = (jnp.dot(h_all, w_fc_ref[...], preferred_element_type=jnp.float32)
           + b_fc_ref[...])
    out_ref[...] = out.reshape(T, Bp, Op)


def lstm_forward(x, w_ih, w_hh, b_ih, b_hh, w_fc, b_fc, *, t_chunk=32):
    """x: (S, B, I); PyTorch-convention parameters:
       w_ih (4H, I), w_hh (4H, H), b_ih/b_hh (4H,), w_fc (O, H), b_fc (O,)."""
    S, B, I = x.shape
    H = w_hh.shape[1]
    O = w_fc.shape[0]

    LANE, SUB = 128, 8
    Hp = _round_up(H, LANE)
    Op = _round_up(O, LANE)
    Bp = _round_up(B, SUB)
    T = min(t_chunk, S)
    Sp = _round_up(S, T)
    n_chunks = Sp // T

    x = x.astype(jnp.float32)

    # --- Pad parameters per-gate so gate k owns lanes [k*Hp, (k+1)*Hp). ---
    w_ih_p = jnp.zeros((4, Hp, I), jnp.float32).at[:, :H, :].set(
        w_ih.reshape(4, H, I).astype(jnp.float32))
    w_hh_p = jnp.zeros((4, Hp, Hp), jnp.float32).at[:, :H, :H].set(
        w_hh.reshape(4, H, H).astype(jnp.float32))
    b_p = jnp.zeros((4, Hp), jnp.float32).at[:, :H].set(
        (b_ih + b_hh).reshape(4, H).astype(jnp.float32))

    # --- Hoisted, time-invariant input projection: one big matmul (XLA). ---
    gx = (x.reshape(S * B, I) @ w_ih_p.reshape(4 * Hp, I).T
          + b_p.reshape(1, 4 * Hp)).reshape(S, B, 4 * Hp)
    gx_p = jnp.zeros((Sp, Bp, 4 * Hp), jnp.float32).at[:S, :B, :].set(gx)

    # --- Kernel-side weights: transposed, bf16 MXU operands. ---
    w_hh_t = w_hh_p.reshape(4 * Hp, Hp).T.astype(jnp.bfloat16)      # (Hp, 4Hp)
    w_fc_t = (jnp.zeros((Op, Hp), jnp.float32)
              .at[:O, :H].set(w_fc.astype(jnp.float32))
              .T.astype(jnp.bfloat16))                              # (Hp, Op)
    b_fc_p = jnp.zeros((1, Op), jnp.float32).at[0, :O].set(
        b_fc.astype(jnp.float32))

    out = pl.pallas_call(
        lstm_kernel,
        out_shape=jax.ShapeDtypeStruct((Sp, Bp, Op), jnp.float32),
        grid=(n_chunks,),
        in_specs=[
            pl.BlockSpec((T, Bp, 4 * Hp), lambda s: (s, 0, 0)),   # gates_x chunk
            pl.BlockSpec((Hp, 4 * Hp), lambda s: (0, 0)),         # W_hh^T
            pl.BlockSpec((Hp, Op), lambda s: (0, 0)),             # W_fc^T
            pl.BlockSpec((1, Op), lambda s: (0, 0)),              # b_fc
        ],
        out_specs=pl.BlockSpec((T, Bp, Op), lambda s: (s, 0, 0)),
        scratch_shapes=[
            pltpu.VMEM((Bp, Hp), jnp.float32),       # h carry across chunks
            pltpu.VMEM((Bp, Hp), jnp.float32),       # c carry across chunks
            pltpu.VMEM((T, Bp, Hp), jnp.bfloat16),   # per-step h for FC head
        ],
        compiler_params=pltpu.CompilerParams(
            dimension_semantics=("arbitrary",)),   # time is sequential
        # TODO(synk): for production-sized H on v7x, single-buffer the
        # loop-invariant weight specs (pipeline_mode=pl.Buffered(1)) and set
        # vmem_limit_bytes; the recurrence itself cannot use the 2nd TC.
    )(gx_p, w_hh_t, w_fc_t, b_fc_p)

    return out[:S, :B, :O]


def lstm_reference(x, w_ih, w_hh, b_ih, b_hh, w_fc, b_fc):
    """Pure-JAX reference matching PyTorch nn.LSTM + nn.Linear semantics."""
    S, B, I = x.shape
    H = w_hh.shape[1]
    b = b_ih + b_hh

    def step(carry, x_t):
        h, c = carry
        gates = x_t @ w_ih.T + h @ w_hh.T + b
        i = jax.nn.sigmoid(gates[:, 0 * H:1 * H])
        f = jax.nn.sigmoid(gates[:, 1 * H:2 * H])
        g = jnp.tanh(gates[:, 2 * H:3 * H])
        o = jax.nn.sigmoid(gates[:, 3 * H:4 * H])
        c = f * c + i * g
        h = o * jnp.tanh(c)
        return (h, c), h

    h0 = jnp.zeros((B, H), jnp.float32)
    c0 = jnp.zeros((B, H), jnp.float32)
    _, hs = jax.lax.scan(step, (h0, c0), x)
    return hs @ w_fc.T + b_fc


if __name__ == "__main__":
    # Small shapes consistent with the module's forward.
    seq_len, batch, input_size, hidden_size, output_size = 8, 4, 16, 32, 8

    key = jax.random.PRNGKey(0)
    ks = jax.random.split(key, 8)
    k_init = 1.0 / jnp.sqrt(hidden_size)   # PyTorch-style uniform(-1/sqrt(H), 1/sqrt(H))

    x = jax.random.normal(ks[0], (seq_len, batch, input_size), jnp.float32)
    w_ih = jax.random.uniform(ks[1], (4 * hidden_size, input_size),
                              jnp.float32, -k_init, k_init)
    w_hh = jax.random.uniform(ks[2], (4 * hidden_size, hidden_size),
                              jnp.float32, -k_init, k_init)
    b_ih = jax.random.uniform(ks[3], (4 * hidden_size,), jnp.float32, -k_init, k_init)
    b_hh = jax.random.uniform(ks[4], (4 * hidden_size,), jnp.float32, -k_init, k_init)
    w_fc = jax.random.uniform(ks[5], (output_size, hidden_size),
                              jnp.float32, -k_init, k_init)
    b_fc = jax.random.uniform(ks[6], (output_size,), jnp.float32, -k_init, k_init)

    out = lstm_forward(x, w_ih, w_hh, b_ih, b_hh, w_fc, b_fc)
    out = jax.block_until_ready(out)

    ref = lstm_reference(x, w_ih, w_hh, b_ih, b_hh, w_fc, b_fc)
    assert out.shape == (seq_len, batch, output_size)
    # bf16 MXU operands (f32 accumulation) -> slightly relaxed tolerance.
    assert jnp.allclose(out, ref, rtol=2e-2, atol=2e-2), "mismatch vs reference"

    print("KERNEL_OK")
</pallas_src>

<mosaic_0001>
module attributes {stable_mosaic.version = 11 : i64} {
  func.func @lstm_kernel(%arg0: i32, %arg1: memref<8x8x512xf32, #tpu.memory_space<vmem>>, %arg2: memref<128x512xbf16, #tpu.memory_space<vmem>>, %arg3: memref<128x128xbf16, #tpu.memory_space<vmem>>, %arg4: memref<1x128xf32, #tpu.memory_space<vmem>>, %arg5: memref<8x8x128xf32, #tpu.memory_space<vmem>>, %arg6: memref<8x128xf32, #tpu.memory_space<vmem>>, %arg7: memref<8x128xf32, #tpu.memory_space<vmem>>, %arg8: memref<8x8x128xbf16, #tpu.memory_space<vmem>>) attributes {dimension_semantics = [#tpu.dimension_semantics<arbitrary>], iteration_bounds = array<i64: 1>, scalar_prefetch = 0 : i64, scratch_operands = 3 : i64, tpu.core_type = #tpu.core_type<tc>, window_params = [{transform_indices = @transform_0, window_bounds = array<i64: 8, 8, 512>}, {pipeline_mode = #tpu.pipeline_mode<synchronous>, transform_indices = @transform_1, window_bounds = array<i64: 128, 512>}, {pipeline_mode = #tpu.pipeline_mode<synchronous>, transform_indices = @transform_2, window_bounds = array<i64: 128, 128>}, {pipeline_mode = #tpu.pipeline_mode<synchronous>, transform_indices = @transform_3, window_bounds = array<i64: 1, 128>}, {transform_indices = @transform_4, window_bounds = array<i64: 8, 8, 128>}]} {
    %c0_i32 = arith.constant 0 : i32
    %0 = arith.cmpi eq, %arg0, %c0_i32 : i32
    %1 = arith.extui %0 : i1 to i32
    %c0_i32_0 = arith.constant 0 : i32
    %2 = arith.cmpi ne, %1, %c0_i32_0 : i32
    scf.if %2 {
      %cst_99 = arith.constant 0.000000e+00 : f32
      %312 = vector.broadcast %cst_99 : f32 to vector<8x128xf32>
      %c0_100 = arith.constant 0 : index
      %c0_101 = arith.constant 0 : index
      %313 = vector.load %arg6[%c0_100, %c0_101] : memref<8x128xf32, #tpu.memory_space<vmem>>, vector<8x128xf32>
      tpu.vector_store %arg6[%c0_100, %c0_101], %312 {strides = array<i32>} : memref<8x128xf32, #tpu.memory_space<vmem>>, vector<8x128xf32>,
      %cst_102 = arith.constant 0.000000e+00 : f32
      %314 = vector.broadcast %cst_102 : f32 to vector<8x128xf32>
      %c0_103 = arith.constant 0 : index
      %c0_104 = arith.constant 0 : index
      %315 = vector.load %arg7[%c0_103, %c0_104] : memref<8x128xf32, #tpu.memory_space<vmem>>, vector<8x128xf32>
      tpu.vector_store %arg7[%c0_103, %c0_104], %314 {strides = array<i32>} : memref<8x128xf32, #tpu.memory_space<vmem>>, vector<8x128xf32>,
    } else {
    }
    %c0 = arith.constant 0 : index
    %c0_1 = arith.constant 0 : index
    %3 = vector.load %arg6[%c0, %c0_1] : memref<8x128xf32, #tpu.memory_space<vmem>>, vector<8x128xf32>
    %c0_2 = arith.constant 0 : index
    %c0_3 = arith.constant 0 : index
    %4 = vector.load %arg7[%c0_2, %c0_3] : memref<8x128xf32, #tpu.memory_space<vmem>>, vector<8x128xf32>
    %c0_i32_4 = arith.constant 0 : i32
    %5 = arith.index_cast %c0_i32_4 : i32 to index
    %c0_5 = arith.constant 0 : index
    %c0_6 = arith.constant 0 : index
    %6 = vector.load %arg1[%5, %c0_5, %c0_6] : memref<8x8x512xf32, #tpu.memory_space<vmem>>, vector<1x8x512xf32>
    %7 = vector.shape_cast %6 : vector<1x8x512xf32> to vector<8x512xf32>
    %8 = arith.truncf %3 : vector<8x128xf32> to vector<8x128xbf16>
    %c0_7 = arith.constant 0 : index
    %c0_8 = arith.constant 0 : index
    %9 = vector.load %arg2[%c0_7, %c0_8] : memref<128x512xbf16, #tpu.memory_space<vmem>>, vector<128x512xbf16>
    %cst = arith.constant dense<0.000000e+00> : vector<8x512xf32>
    %10 = tpu.matmul %8, %9, %cst {dimension_numbers = #tpu.dot_dimension_numbers<[1], [0], [0], [1], [0, 0, 1, 1], [], []>} : vector<8x128xbf16>, vector<128x512xbf16>, vector<8x512xf32> -> vector<8x512xf32>
    %11 = arith.addf %7, %10 : vector<8x512xf32>
    %12 = vector.extract_strided_slice %11 {offsets = [0, 0], sizes = [8, 128], strides = [1, 1]} : vector<8x512xf32> to vector<8x128xf32>
    %13 = arith.negf %12 : vector<8x128xf32>
    %14 = math.exp %13 : vector<8x128xf32>
    %cst_9 = arith.constant 1.000000e+00 : f32
    %15 = vector.broadcast %cst_9 : f32 to vector<8x128xf32>
    %16 = arith.addf %15, %14 : vector<8x128xf32>
    %17 = arith.divf %15, %16 : vector<8x128xf32>
    %18 = vector.extract_strided_slice %11 {offsets = [0, 128], sizes = [8, 128], strides = [1, 1]} : vector<8x512xf32> to vector<8x128xf32>
    %19 = arith.negf %18 : vector<8x128xf32>
    %20 = math.exp %19 : vector<8x128xf32>
    %cst_10 = arith.constant 1.000000e+00 : f32
    %21 = vector.broadcast %cst_10 : f32 to vector<8x128xf32>
    %22 = arith.addf %21, %20 : vector<8x128xf32>
    %23 = arith.divf %21, %22 : vector<8x128xf32>
    %24 = vector.extract_strided_slice %11 {offsets = [0, 256], sizes = [8, 128], strides = [1, 1]} : vector<8x512xf32> to vector<8x128xf32>
    %25 = math.tanh %24 : vector<8x128xf32>
    %26 = vector.extract_strided_slice %11 {offsets = [0, 384], sizes = [8, 128], strides = [1, 1]} : vector<8x512xf32> to vector<8x128xf32>
    %27 = arith.negf %26 : vector<8x128xf32>
    %28 = math.exp %27 : vector<8x128xf32>
    %cst_11 = arith.constant 1.000000e+00 : f32
    %29 = vector.broadcast %cst_11 : f32 to vector<8x128xf32>
    %30 = arith.addf %29, %28 : vector<8x128xf32>
    %31 = arith.divf %29, %30 : vector<8x128xf32>
    %32 = arith.mulf %23, %4 : vector<8x128xf32>
    %33 = arith.mulf %17, %25 : vector<8x128xf32>
    %34 = arith.addf %32, %33 : vector<8x128xf32>
    %35 = math.tanh %34 : vector<8x128xf32>
    %36 = arith.mulf %31, %35 : vector<8x128xf32>
    %37 = arith.truncf %36 : vector<8x128xf32> to vector<8x128xbf16>
    %38 = arith.index_cast %c0_i32_4 : i32 to index
    %c0_12 = arith.constant 0 : index
    %c0_13 = arith.constant 0 : index
    %39 = vector.load %arg8[%38, %c0_12, %c0_13] : memref<8x8x128xbf16, #tpu.memory_space<vmem>>, vector<1x8x128xbf16>
    %40 = vector.shape_cast %39 : vector<1x8x128xbf16> to vector<8x128xbf16>
    %41 = vector.shape_cast %37 : vector<8x128xbf16> to vector<1x8x128xbf16>
    tpu.vector_store %arg8[%38, %c0_12, %c0_13], %41 {strides = array<i32>} : memref<8x8x128xbf16, #tpu.memory_space<vmem>>, vector<1x8x128xbf16>,
    %c1_i32 = arith.constant 1 : i32
    %42 = arith.index_cast %c1_i32 : i32 to index
    %c0_14 = arith.constant 0 : index
    %c0_15 = arith.constant 0 : index
    %43 = vector.load %arg1[%42, %c0_14, %c0_15] : memref<8x8x512xf32, #tpu.memory_space<vmem>>, vector<1x8x512xf32>
    %44 = vector.shape_cast %43 : vector<1x8x512xf32> to vector<8x512xf32>
    %45 = arith.truncf %36 : vector<8x128xf32> to vector<8x128xbf16>
    %c0_16 = arith.constant 0 : index
    %c0_17 = arith.constant 0 : index
    %46 = vector.load %arg2[%c0_16, %c0_17] : memref<128x512xbf16, #tpu.memory_space<vmem>>, vector<128x512xbf16>
    %cst_18 = arith.constant dense<0.000000e+00> : vector<8x512xf32>
    %47 = tpu.matmul %45, %46, %cst_18 {dimension_numbers = #tpu.dot_dimension_numbers<[1], [0], [0], [1], [0, 0, 1, 1], [], []>} : vector<8x128xbf16>, vector<128x512xbf16>, vector<8x512xf32> -> vector<8x512xf32>
    %48 = arith.addf %44, %47 : vector<8x512xf32>
    %49 = vector.extract_strided_slice %48 {offsets = [0, 0], sizes = [8, 128], strides = [1, 1]} : vector<8x512xf32> to vector<8x128xf32>
    %50 = arith.negf %49 : vector<8x128xf32>
    %51 = math.exp %50 : vector<8x128xf32>
    %cst_19 = arith.constant 1.000000e+00 : f32
    %52 = vector.broadcast %cst_19 : f32 to vector<8x128xf32>
    %53 = arith.addf %52, %51 : vector<8x128xf32>
    %54 = arith.divf %52, %53 : vector<8x128xf32>
    %55 = vector.extract_strided_slice %48 {offsets = [0, 128], sizes = [8, 128], strides = [1, 1]} : vector<8x512xf32> to vector<8x128xf32>
    %56 = arith.negf %55 : vector<8x128xf32>
    %57 = math.exp %56 : vector<8x128xf32>
    %cst_20 = arith.constant 1.000000e+00 : f32
    %58 = vector.broadcast %cst_20 : f32 to vector<8x128xf32>
    %59 = arith.addf %58, %57 : vector<8x128xf32>
    %60 = arith.divf %58, %59 : vector<8x128xf32>
    %61 = vector.extract_strided_slice %48 {offsets = [0, 256], sizes = [8, 128], strides = [1, 1]} : vector<8x512xf32> to vector<8x128xf32>
    %62 = math.tanh %61 : vector<8x128xf32>
    %63 = vector.extract_strided_slice %48 {offsets = [0, 384], sizes = [8, 128], strides = [1, 1]} : vector<8x512xf32> to vector<8x128xf32>
    %64 = arith.negf %63 : vector<8x128xf32>
    %65 = math.exp %64 : vector<8x128xf32>
    %cst_21 = arith.constant 1.000000e+00 : f32
    %66 = vector.broadcast %cst_21 : f32 to vector<8x128xf32>
    %67 = arith.addf %66, %65 : vector<8x128xf32>
    %68 = arith.divf %66, %67 : vector<8x128xf32>
    %69 = arith.mulf %60, %34 : vector<8x128xf32>
    %70 = arith.mulf %54, %62 : vector<8x128xf32>
    %71 = arith.addf %69, %70 : vector<8x128xf32>
    %72 = math.tanh %71 : vector<8x128xf32>
    %73 = arith.mulf %68, %72 : vector<8x128xf32>
    %74 = arith.truncf %73 : vector<8x128xf32> to vector<8x128xbf16>
    %75 = arith.index_cast %c1_i32 : i32 to index
    %c0_22 = arith.constant 0 : index
    %c0_23 = arith.constant 0 : index
    %76 = vector.load %arg8[%75, %c0_22, %c0_23] : memref<8x8x128xbf16, #tpu.memory_space<vmem>>, vector<1x8x128xbf16>
    %77 = vector.shape_cast %76 : vector<1x8x128xbf16> to vector<8x128xbf16>
    %78 = vector.shape_cast %74 : vector<8x128xbf16> to vector<1x8x128xbf16>
    tpu.vector_store %arg8[%75, %c0_22, %c0_23], %78 {strides = array<i32>} : memref<8x8x128xbf16, #tpu.memory_space<vmem>>, vector<1x8x128xbf16>,
    %c2_i32 = arith.constant 2 : i32
    %79 = arith.index_cast %c2_i32 : i32 to index
    %c0_24 = arith.constant 0 : index
    %c0_25 = arith.constant 0 : index
    %80 = vector.load %arg1[%79, %c0_24, %c0_25] : memref<8x8x512xf32, #tpu.memory_space<vmem>>, vector<1x8x512xf32>
    %81 = vector.shape_cast %80 : vector<1x8x512xf32> to vector<8x512xf32>
    %82 = arith.truncf %73 : vector<8x128xf32> to vector<8x128xbf16>
    %c0_26 = arith.constant 0 : index
    %c0_27 = arith.constant 0 : index
    %83 = vector.load %arg2[%c0_26, %c0_27] : memref<128x512xbf16, #tpu.memory_space<vmem>>, vector<128x512xbf16>
    %cst_28 = arith.constant dense<0.000000e+00> : vector<8x512xf32>
    %84 = tpu.matmul %82, %83, %cst_28 {dimension_numbers = #tpu.dot_dimension_numbers<[1], [0], [0], [1], [0, 0, 1, 1], [], []>} : vector<8x128xbf16>, vector<128x512xbf16>, vector<8x512xf32> -> vector<8x512xf32>
    %85 = arith.addf %81, %84 : vector<8x512xf32>
    %86 = vector.extract_strided_slice %85 {offsets = [0, 0], sizes = [8, 128], strides = [1, 1]} : vector<8x512xf32> to vector<8x128xf32>
    %87 = arith.negf %86 : vector<8x128xf32>
    %88 = math.exp %87 : vector<8x128xf32>
    %cst_29 = arith.constant 1.000000e+00 : f32
    %89 = vector.broadcast %cst_29 : f32 to vector<8x128xf32>
    %90 = arith.addf %89, %88 : vector<8x128xf32>
    %91 = arith.divf %89, %90 : vector<8x128xf32>
    %92 = vector.extract_strided_slice %85 {offsets = [0, 128], sizes = [8, 128], strides = [1, 1]} : vector<8x512xf32> to vector<8x128xf32>
    %93 = arith.negf %92 : vector<8x128xf32>
    %94 = math.exp %93 : vector<8x128xf32>
    %cst_30 = arith.constant 1.000000e+00 : f32
    %95 = vector.broadcast %cst_30 : f32 to vector<8x128xf32>
    %96 = arith.addf %95, %94 : vector<8x128xf32>
    %97 = arith.divf %95, %96 : vector<8x128xf32>
    %98 = vector.extract_strided_slice %85 {offsets = [0, 256], sizes = [8, 128], strides = [1, 1]} : vector<8x512xf32> to vector<8x128xf32>
    %99 = math.tanh %98 : vector<8x128xf32>
    %100 = vector.extract_strided_slice %85 {offsets = [0, 384], sizes = [8, 128], strides = [1, 1]} : vector<8x512xf32> to vector<8x128xf32>
    %101 = arith.negf %100 : vector<8x128xf32>
    %102 = math.exp %101 : vector<8x128xf32>
    %cst_31 = arith.constant 1.000000e+00 : f32
    %103 = vector.broadcast %cst_31 : f32 to vector<8x128xf32>
    %104 = arith.addf %103, %102 : vector<8x128xf32>
    %105 = arith.divf %103, %104 : vector<8x128xf32>
    %106 = arith.mulf %97, %71 : vector<8x128xf32>
    %107 = arith.mulf %91, %99 : vector<8x128xf32>
    %108 = arith.addf %106, %107 : vector<8x128xf32>
    %109 = math.tanh %108 : vector<8x128xf32>
    %110 = arith.mulf %105, %109 : vector<8x128xf32>
    %111 = arith.truncf %110 : vector<8x128xf32> to vector<8x128xbf16>
    %112 = arith.index_cast %c2_i32 : i32 to index
    %c0_32 = arith.constant 0 : index
    %c0_33 = arith.constant 0 : index
    %113 = vector.load %arg8[%112, %c0_32, %c0_33] : memref<8x8x128xbf16, #tpu.memory_space<vmem>>, vector<1x8x128xbf16>
    %114 = vector.shape_cast %113 : vector<1x8x128xbf16> to vector<8x128xbf16>
    %115 = vector.shape_cast %111 : vector<8x128xbf16> to vector<1x8x128xbf16>
    tpu.vector_store %arg8[%112, %c0_32, %c0_33], %115 {strides = array<i32>} : memref<8x8x128xbf16, #tpu.memory_space<vmem>>, vector<1x8x128xbf16>,
    %c3_i32 = arith.constant 3 : i32
    %116 = arith.index_cast %c3_i32 : i32 to index
    %c0_34 = arith.constant 0 : index
    %c0_35 = arith.constant 0 : index
    %117 = vector.load %arg1[%116, %c0_34, %c0_35] : memref<8x8x512xf32, #tpu.memory_space<vmem>>, vector<1x8x512xf32>
    %118 = vector.shape_cast %117 : vector<1x8x512xf32> to vector<8x512xf32>
    %119 = arith.truncf %110 : vector<8x128xf32> to vector<8x128xbf16>
    %c0_36 = arith.constant 0 : index
    %c0_37 = arith.constant 0 : index
    %120 = vector.load %arg2[%c0_36, %c0_37] : memref<128x512xbf16, #tpu.memory_space<vmem>>, vector<128x512xbf16>
    %cst_38 = arith.constant dense<0.000000e+00> : vector<8x512xf32>
    %121 = tpu.matmul %119, %120, %cst_38 {dimension_numbers = #tpu.dot_dimension_numbers<[1], [0], [0], [1], [0, 0, 1, 1], [], []>} : vector<8x128xbf16>, vector<128x512xbf16>, vector<8x512xf32> -> vector<8x512xf32>
    %122 = arith.addf %118, %121 : vector<8x512xf32>
    %123 = vector.extract_strided_slice %122 {offsets = [0, 0], sizes = [8, 128], strides = [1, 1]} : vector<8x512xf32> to vector<8x128xf32>
    %124 = arith.negf %123 : vector<8x128xf32>
    %125 = math.exp %124 : vector<8x128xf32>
    %cst_39 = arith.constant 1.000000e+00 : f32
    %126 = vector.broadcast %cst_39 : f32 to vector<8x128xf32>
    %127 = arith.addf %126, %125 : vector<8x128xf32>
    %128 = arith.divf %126, %127 : vector<8x128xf32>
    %129 = vector.extract_strided_slice %122 {offsets = [0, 128], sizes = [8, 128], strides = [1, 1]} : vector<8x512xf32> to vector<8x128xf32>
    %130 = arith.negf %129 : vector<8x128xf32>
    %131 = math.exp %130 : vector<8x128xf32>
    %cst_40 = arith.constant 1.000000e+00 : f32
    %132 = vector.broadcast %cst_40 : f32 to vector<8x128xf32>
    %133 = arith.addf %132, %131 : vector<8x128xf32>
    %134 = arith.divf %132, %133 : vector<8x128xf32>
    %135 = vector.extract_strided_slice %122 {offsets = [0, 256], sizes = [8, 128], strides = [1, 1]} : vector<8x512xf32> to vector<8x128xf32>
    %136 = math.tanh %135 : vector<8x128xf32>
    %137 = vector.extract_strided_slice %122 {offsets = [0, 384], sizes = [8, 128], strides = [1, 1]} : vector<8x512xf32> to vector<8x128xf32>
    %138 = arith.negf %137 : vector<8x128xf32>
    %139 = math.exp %138 : vector<8x128xf32>
    %cst_41 = arith.constant 1.000000e+00 : f32
    %140 = vector.broadcast %cst_41 : f32 to vector<8x128xf32>
    %141 = arith.addf %140, %139 : vector<8x128xf32>
    %142 = arith.divf %140, %141 : vector<8x128xf32>
    %143 = arith.mulf %134, %108 : vector<8x128xf32>
    %144 = arith.mulf %128, %136 : vector<8x128xf32>
    %145 = arith.addf %143, %144 : vector<8x128xf32>
    %146 = math.tanh %145 : vector<8x128xf32>
    %147 = arith.mulf %142, %146 : vector<8x128xf32>
    %148 = arith.truncf %147 : vector<8x128xf32> to vector<8x128xbf16>
    %149 = arith.index_cast %c3_i32 : i32 to index
    %c0_42 = arith.constant 0 : index
    %c0_43 = arith.constant 0 : index
    %150 = vector.load %arg8[%149, %c0_42, %c0_43] : memref<8x8x128xbf16, #tpu.memory_space<vmem>>, vector<1x8x128xbf16>
    %151 = vector.shape_cast %150 : vector<1x8x128xbf16> to vector<8x128xbf16>
    %152 = vector.shape_cast %148 : vector<8x128xbf16> to vector<1x8x128xbf16>
    tpu.vector_store %arg8[%149, %c0_42, %c0_43], %152 {strides = array<i32>} : memref<8x8x128xbf16, #tpu.memory_space<vmem>>, vector<1x8x128xbf16>,
    %c4_i32 = arith.constant 4 : i32
    %153 = arith.index_cast %c4_i32 : i32 to index
    %c0_44 = arith.constant 0 : index
    %c0_45 = arith.constant 0 : index
    %154 = vector.load %arg1[%153, %c0_44, %c0_45] : memref<8x8x512xf32, #tpu.memory_space<vmem>>, vector<1x8x512xf32>
    %155 = vector.shape_cast %154 : vector<1x8x512xf32> to vector<8x512xf32>
    %156 = arith.truncf %147 : vector<8x128xf32> to vector<8x128xbf16>
    %c0_46 = arith.constant 0 : index
    %c0_47 = arith.constant 0 : index
    %157 = vector.load %arg2[%c0_46, %c0_47] : memref<128x512xbf16, #tpu.memory_space<vmem>>, vector<128x512xbf16>
    %cst_48 = arith.constant dense<0.000000e+00> : vector<8x512xf32>
    %158 = tpu.matmul %156, %157, %cst_48 {dimension_numbers = #tpu.dot_dimension_numbers<[1], [0], [0], [1], [0, 0, 1, 1], [], []>} : vector<8x128xbf16>, vector<128x512xbf16>, vector<8x512xf32> -> vector<8x512xf32>
    %159 = arith.addf %155, %158 : vector<8x512xf32>
    %160 = vector.extract_strided_slice %159 {offsets = [0, 0], sizes = [8, 128], strides = [1, 1]} : vector<8x512xf32> to vector<8x128xf32>
    %161 = arith.negf %160 : vector<8x128xf32>
    %162 = math.exp %161 : vector<8x128xf32>
    %cst_49 = arith.constant 1.000000e+00 : f32
    %163 = vector.broadcast %cst_49 : f32 to vector<8x128xf32>
    %164 = arith.addf %163, %162 : vector<8x128xf32>
    %165 = arith.divf %163, %164 : vector<8x128xf32>
    %166 = vector.extract_strided_slice %159 {offsets = [0, 128], sizes = [8, 128], strides = [1, 1]} : vector<8x512xf32> to vector<8x128xf32>
    %167 = arith.negf %166 : vector<8x128xf32>
    %168 = math.exp %167 : vector<8x128xf32>
    %cst_50 = arith.constant 1.000000e+00 : f32
    %169 = vector.broadcast %cst_50 : f32 to vector<8x128xf32>
    %170 = arith.addf %169, %168 : vector<8x128xf32>
    %171 = arith.divf %169, %170 : vector<8x128xf32>
    %172 = vector.extract_strided_slice %159 {offsets = [0, 256], sizes = [8, 128], strides = [1, 1]} : vector<8x512xf32> to vector<8x128xf32>
    %173 = math.tanh %172 : vector<8x128xf32>
    %174 = vector.extract_strided_slice %159 {offsets = [0, 384], sizes = [8, 128], strides = [1, 1]} : vector<8x512xf32> to vector<8x128xf32>
    %175 = arith.negf %174 : vector<8x128xf32>
    %176 = math.exp %175 : vector<8x128xf32>
    %cst_51 = arith.constant 1.000000e+00 : f32
    %177 = vector.broadcast %cst_51 : f32 to vector<8x128xf32>
    %178 = arith.addf %177, %176 : vector<8x128xf32>
    %179 = arith.divf %177, %178 : vector<8x128xf32>
    %180 = arith.mulf %171, %145 : vector<8x128xf32>
    %181 = arith.mulf %165, %173 : vector<8x128xf32>
    %182 = arith.addf %180, %181 : vector<8x128xf32>
    %183 = math.tanh %182 : vector<8x128xf32>
    %184 = arith.mulf %179, %183 : vector<8x128xf32>
    %185 = arith.truncf %184 : vector<8x128xf32> to vector<8x128xbf16>
    %186 = arith.index_cast %c4_i32 : i32 to index
    %c0_52 = arith.constant 0 : index
    %c0_53 = arith.constant 0 : index
    %187 = vector.load %arg8[%186, %c0_52, %c0_53] : memref<8x8x128xbf16, #tpu.memory_space<vmem>>, vector<1x8x128xbf16>
    %188 = vector.shape_cast %187 : vector<1x8x128xbf16> to vector<8x128xbf16>
    %189 = vector.shape_cast %185 : vector<8x128xbf16> to vector<1x8x128xbf16>
    tpu.vector_store %arg8[%186, %c0_52, %c0_53], %189 {strides = array<i32>} : memref<8x8x128xbf16, #tpu.memory_space<vmem>>, vector<1x8x128xbf16>,
    %c5_i32 = arith.constant 5 : i32
    %190 = arith.index_cast %c5_i32 : i32 to index
    %c0_54 = arith.constant 0 : index
    %c0_55 = arith.constant 0 : index
    %191 = vector.load %arg1[%190, %c0_54, %c0_55] : memref<8x8x512xf32, #tpu.memory_space<vmem>>, vector<1x8x512xf32>
    %192 = vector.shape_cast %191 : vector<1x8x512xf32> to vector<8x512xf32>
    %193 = arith.truncf %184 : vector<8x128xf32> to vector<8x128xbf16>
    %c0_56 = arith.constant 0 : index
    %c0_57 = arith.constant 0 : index
    %194 = vector.load %arg2[%c0_56, %c0_57] : memref<128x512xbf16, #tpu.memory_space<vmem>>, vector<128x512xbf16>
    %cst_58 = arith.constant dense<0.000000e+00> : vector<8x512xf32>
    %195 = tpu.matmul %193, %194, %cst_58 {dimension_numbers = #tpu.dot_dimension_numbers<[1], [0], [0], [1], [0, 0, 1, 1], [], []>} : vector<8x128xbf16>, vector<128x512xbf16>, vector<8x512xf32> -> vector<8x512xf32>
    %196 = arith.addf %192, %195 : vector<8x512xf32>
    %197 = vector.extract_strided_slice %196 {offsets = [0, 0], sizes = [8, 128], strides = [1, 1]} : vector<8x512xf32> to vector<8x128xf32>
    %198 = arith.negf %197 : vector<8x128xf32>
    %199 = math.exp %198 : vector<8x128xf32>
    %cst_59 = arith.constant 1.000000e+00 : f32
    %200 = vector.broadcast %cst_59 : f32 to vector<8x128xf32>
    %201 = arith.addf %200, %199 : vector<8x128xf32>
    %202 = arith.divf %200, %201 : vector<8x128xf32>
    %203 = vector.extract_strided_slice %196 {offsets = [0, 128], sizes = [8, 128], strides = [1, 1]} : vector<8x512xf32> to vector<8x128xf32>
    %204 = arith.negf %203 : vector<8x128xf32>
    %205 = math.exp %204 : vector<8x128xf32>
    %cst_60 = arith.constant 1.000000e+00 : f32
    %206 = vector.broadcast %cst_60 : f32 to vector<8x128xf32>
    %207 = arith.addf %206, %205 : vector<8x128xf32>
    %208 = arith.divf %206, %207 : vector<8x128xf32>
    %209 = vector.extract_strided_slice %196 {offsets = [0, 256], sizes = [8, 128], strides = [1, 1]} : vector<8x512xf32> to vector<8x128xf32>
    %210 = math.tanh %209 : vector<8x128xf32>
    %211 = vector.extract_strided_slice %196 {offsets = [0, 384], sizes = [8, 128], strides = [1, 1]} : vector<8x512xf32> to vector<8x128xf32>
    %212 = arith.negf %211 : vector<8x128xf32>
    %213 = math.exp %212 : vector<8x128xf32>
    %cst_61 = arith.constant 1.000000e+00 : f32
    %214 = vector.broadcast %cst_61 : f32 to vector<8x128xf32>
    %215 = arith.addf %214, %213 : vector<8x128xf32>
    %216 = arith.divf %214, %215 : vector<8x128xf32>
    %217 = arith.mulf %208, %182 : vector<8x128xf32>
    %218 = arith.mulf %202, %210 : vector<8x128xf32>
    %219 = arith.addf %217, %218 : vector<8x128xf32>
    %220 = math.tanh %219 : vector<8x128xf32>
    %221 = arith.mulf %216, %220 : vector<8x128xf32>
    %222 = arith.truncf %221 : vector<8x128xf32> to vector<8x128xbf16>
    %223 = arith.index_cast %c5_i32 : i32 to index
    %c0_62 = arith.constant 0 : index
    %c0_63 = arith.constant 0 : index
    %224 = vector.load %arg8[%223, %c0_62, %c0_63] : memref<8x8x128xbf16, #tpu.memory_space<vmem>>, vector<1x8x128xbf16>
    %225 = vector.shape_cast %224 : vector<1x8x128xbf16> to vector<8x128xbf16>
    %226 = vector.shape_cast %222 : vector<8x128xbf16> to vector<1x8x128xbf16>
    tpu.vector_store %arg8[%223, %c0_62, %c0_63], %226 {strides = array<i32>} : memref<8x8x128xbf16, #tpu.memory_space<vmem>>, vector<1x8x128xbf16>,
    %c6_i32 = arith.constant 6 : i32
    %227 = arith.index_cast %c6_i32 : i32 to index
    %c0_64 = arith.constant 0 : index
    %c0_65 = arith.constant 0 : index
    %228 = vector.load %arg1[%227, %c0_64, %c0_65] : memref<8x8x512xf32, #tpu.memory_space<vmem>>, vector<1x8x512xf32>
    %229 = vector.shape_cast %228 : vector<1x8x512xf32> to vector<8x512xf32>
    %230 = arith.truncf %221 : vector<8x128xf32> to vector<8x128xbf16>
    %c0_66 = arith.constant 0 : index
    %c0_67 = arith.constant 0 : index
    %231 = vector.load %arg2[%c0_66, %c0_67] : memref<128x512xbf16, #tpu.memory_space<vmem>>, vector<128x512xbf16>
    %cst_68 = arith.constant dense<0.000000e+00> : vector<8x512xf32>
    %232 = tpu.matmul %230, %231, %cst_68 {dimension_numbers = #tpu.dot_dimension_numbers<[1], [0], [0], [1], [0, 0, 1, 1], [], []>} : vector<8x128xbf16>, vector<128x512xbf16>, vector<8x512xf32> -> vector<8x512xf32>
    %233 = arith.addf %229, %232 : vector<8x512xf32>
    %234 = vector.extract_strided_slice %233 {offsets = [0, 0], sizes = [8, 128], strides = [1, 1]} : vector<8x512xf32> to vector<8x128xf32>
    %235 = arith.negf %234 : vector<8x128xf32>
    %236 = math.exp %235 : vector<8x128xf32>
    %cst_69 = arith.constant 1.000000e+00 : f32
    %237 = vector.broadcast %cst_69 : f32 to vector<8x128xf32>
    %238 = arith.addf %237, %236 : vector<8x128xf32>
    %239 = arith.divf %237, %238 : vector<8x128xf32>
    %240 = vector.extract_strided_slice %233 {offsets = [0, 128], sizes = [8, 128], strides = [1, 1]} : vector<8x512xf32> to vector<8x128xf32>
    %241 = arith.negf %240 : vector<8x128xf32>
    %242 = math.exp %241 : vector<8x128xf32>
    %cst_70 = arith.constant 1.000000e+00 : f32
    %243 = vector.broadcast %cst_70 : f32 to vector<8x128xf32>
    %244 = arith.addf %243, %242 : vector<8x128xf32>
    %245 = arith.divf %243, %244 : vector<8x128xf32>
    %246 = vector.extract_strided_slice %233 {offsets = [0, 256], sizes = [8, 128], strides = [1, 1]} : vector<8x512xf32> to vector<8x128xf32>
    %247 = math.tanh %246 : vector<8x128xf32>
    %248 = vector.extract_strided_slice %233 {offsets = [0, 384], sizes = [8, 128], strides = [1, 1]} : vector<8x512xf32> to vector<8x128xf32>
    %249 = arith.negf %248 : vector<8x128xf32>
    %250 = math.exp %249 : vector<8x128xf32>
    %cst_71 = arith.constant 1.000000e+00 : f32
    %251 = vector.broadcast %cst_71 : f32 to vector<8x128xf32>
    %252 = arith.addf %251, %250 : vector<8x128xf32>
    %253 = arith.divf %251, %252 : vector<8x128xf32>
    %254 = arith.mulf %245, %219 : vector<8x128xf32>
    %255 = arith.mulf %239, %247 : vector<8x128xf32>
    %256 = arith.addf %254, %255 : vector<8x128xf32>
    %257 = math.tanh %256 : vector<8x128xf32>
    %258 = arith.mulf %253, %257 : vector<8x128xf32>
    %259 = arith.truncf %258 : vector<8x128xf32> to vector<8x128xbf16>
    %260 = arith.index_cast %c6_i32 : i32 to index
    %c0_72 = arith.constant 0 : index
    %c0_73 = arith.constant 0 : index
    %261 = vector.load %arg8[%260, %c0_72, %c0_73] : memref<8x8x128xbf16, #tpu.memory_space<vmem>>, vector<1x8x128xbf16>
    %262 = vector.shape_cast %261 : vector<1x8x128xbf16> to vector<8x128xbf16>
    %263 = vector.shape_cast %259 : vector<8x128xbf16> to vector<1x8x128xbf16>
    tpu.vector_store %arg8[%260, %c0_72, %c0_73], %263 {strides = array<i32>} : memref<8x8x128xbf16, #tpu.memory_space<vmem>>, vector<1x8x128xbf16>,
    %c7_i32 = arith.constant 7 : i32
    %264 = arith.index_cast %c7_i32 : i32 to index
    %c0_74 = arith.constant 0 : index
    %c0_75 = arith.constant 0 : index
    %265 = vector.load %arg1[%264, %c0_74, %c0_75] : memref<8x8x512xf32, #tpu.memory_space<vmem>>, vector<1x8x512xf32>
    %266 = vector.shape_cast %265 : vector<1x8x512xf32> to vector<8x512xf32>
    %267 = arith.truncf %258 : vector<8x128xf32> to vector<8x128xbf16>
    %c0_76 = arith.constant 0 : index
    %c0_77 = arith.constant 0 : index
    %268 = vector.load %arg2[%c0_76, %c0_77] : memref<128x512xbf16, #tpu.memory_space<vmem>>, vector<128x512xbf16>
    %cst_78 = arith.constant dense<0.000000e+00> : vector<8x512xf32>
    %269 = tpu.matmul %267, %268, %cst_78 {dimension_numbers = #tpu.dot_dimension_numbers<[1], [0], [0], [1], [0, 0, 1, 1], [], []>} : vector<8x128xbf16>, vector<128x512xbf16>, vector<8x512xf32> -> vector<8x512xf32>
    %270 = arith.addf %266, %269 : vector<8x512xf32>
    %271 = vector.extract_strided_slice %270 {offsets = [0, 0], sizes = [8, 128], strides = [1, 1]} : vector<8x512xf32> to vector<8x128xf32>
    %272 = arith.negf %271 : vector<8x128xf32>
    %273 = math.exp %272 : vector<8x128xf32>
    %cst_79 = arith.constant 1.000000e+00 : f32
    %274 = vector.broadcast %cst_79 : f32 to vector<8x128xf32>
    %275 = arith.addf %274, %273 : vector<8x128xf32>
    %276 = arith.divf %274, %275 : vector<8x128xf32>
    %277 = vector.extract_strided_slice %270 {offsets = [0, 128], sizes = [8, 128], strides = [1, 1]} : vector<8x512xf32> to vector<8x128xf32>
    %278 = arith.negf %277 : vector<8x128xf32>
    %279 = math.exp %278 : vector<8x128xf32>
    %cst_80 = arith.constant 1.000000e+00 : f32
    %280 = vector.broadcast %cst_80 : f32 to vector<8x128xf32>
    %281 = arith.addf %280, %279 : vector<8x128xf32>
    %282 = arith.divf %280, %281 : vector<8x128xf32>
    %283 = vector.extract_strided_slice %270 {offsets = [0, 256], sizes = [8, 128], strides = [1, 1]} : vector<8x512xf32> to vector<8x128xf32>
    %284 = math.tanh %283 : vector<8x128xf32>
    %285 = vector.extract_strided_slice %270 {offsets = [0, 384], sizes = [8, 128], strides = [1, 1]} : vector<8x512xf32> to vector<8x128xf32>
    %286 = arith.negf %285 : vector<8x128xf32>
    %287 = math.exp %286 : vector<8x128xf32>
    %cst_81 = arith.constant 1.000000e+00 : f32
    %288 = vector.broadcast %cst_81 : f32 to vector<8x128xf32>
    %289 = arith.addf %288, %287 : vector<8x128xf32>
    %290 = arith.divf %288, %289 : vector<8x128xf32>
    %291 = arith.mulf %282, %256 : vector<8x128xf32>
    %292 = arith.mulf %276, %284 : vector<8x128xf32>
    %293 = arith.addf %291, %292 : vector<8x128xf32>
    %294 = math.tanh %293 : vector<8x128xf32>
    %295 = arith.mulf %290, %294 : vector<8x128xf32>
    %296 = arith.truncf %295 : vector<8x128xf32> to vector<8x128xbf16>
    %297 = arith.index_cast %c7_i32 : i32 to index
    %c0_82 = arith.constant 0 : index
    %c0_83 = arith.constant 0 : index
    %298 = vector.load %arg8[%297, %c0_82, %c0_83] : memref<8x8x128xbf16, #tpu.memory_space<vmem>>, vector<1x8x128xbf16>
    %299 = vector.shape_cast %298 : vector<1x8x128xbf16> to vector<8x128xbf16>
    %300 = vector.shape_cast %296 : vector<8x128xbf16> to vector<1x8x128xbf16>
    tpu.vector_store %arg8[%297, %c0_82, %c0_83], %300 {strides = array<i32>} : memref<8x8x128xbf16, #tpu.memory_space<vmem>>, vector<1x8x128xbf16>,
    %c8_i32 = arith.constant 8 : i32
    %c0_84 = arith.constant 0 : index
    %c0_85 = arith.constant 0 : index
    %301 = vector.load %arg6[%c0_84, %c0_85] : memref<8x128xf32, #tpu.memory_space<vmem>>, vector<8x128xf32>
    tpu.vector_store %arg6[%c0_84, %c0_85], %295 {strides = array<i32>} : memref<8x128xf32, #tpu.memory_space<vmem>>, vector<8x128xf32>,
    %c0_86 = arith.constant 0 : index
    %c0_87 = arith.constant 0 : index
    %302 = vector.load %arg7[%c0_86, %c0_87] : memref<8x128xf32, #tpu.memory_space<vmem>>, vector<8x128xf32>
    tpu.vector_store %arg7[%c0_86, %c0_87], %293 {strides = array<i32>} : memref<8x128xf32, #tpu.memory_space<vmem>>, vector<8x128xf32>,
    %c0_88 = arith.constant 0 : index
    %c0_89 = arith.constant 0 : index
    %c0_90 = arith.constant 0 : index
    %303 = vector.load %arg8[%c0_88, %c0_89, %c0_90] : memref<8x8x128xbf16, #tpu.memory_space<vmem>>, vector<8x8x128xbf16>
    %304 = vector.shape_cast %303 : vector<8x8x128xbf16> to vector<64x128xbf16>
    %c0_91 = arith.constant 0 : index
    %c0_92 = arith.constant 0 : index
    %305 = vector.load %arg3[%c0_91, %c0_92] : memref<128x128xbf16, #tpu.memory_space<vmem>>, vector<128x128xbf16>
    %cst_93 = arith.constant dense<0.000000e+00> : vector<64x128xf32>
    %306 = tpu.matmul %304, %305, %cst_93 {dimension_numbers = #tpu.dot_dimension_numbers<[1], [0], [0], [1], [0, 0, 1, 1], [], []>} : vector<64x128xbf16>, vector<128x128xbf16>, vector<64x128xf32> -> vector<64x128xf32>
    %c0_94 = arith.constant 0 : index
    %c0_95 = arith.constant 0 : index
    %307 = vector.load %arg4[%c0_94, %c0_95] : memref<1x128xf32, #tpu.memory_space<vmem>>, vector<1x128xf32>
    %308 = vector.broadcast %307 : vector<1x128xf32> to vector<64x128xf32>
    %309 = arith.addf %306, %308 : vector<64x128xf32>
    %310 = vector.shape_cast %309 : vector<64x128xf32> to vector<8x8x128xf32>
    %c0_96 = arith.constant 0 : index
    %c0_97 = arith.constant 0 : index
    %c0_98 = arith.constant 0 : index
    %311 = vector.load %arg5[%c0_96, %c0_97, %c0_98] : memref<8x8x128xf32, #tpu.memory_space<vmem>>, vector<8x8x128xf32>
    tpu.vector_store %arg5[%c0_96, %c0_97, %c0_98], %310 {strides = array<i32>} : memref<8x8x128xf32, #tpu.memory_space<vmem>>, vector<8x8x128xf32>,
    return
  }
  func.func @transform_0(%arg0: i32) -> (i32, i32, i32) {
    %c0_i32 = arith.constant 0 : i32
    %c0_i32_0 = arith.constant 0 : i32
    %c0_i32_1 = arith.constant 0 : i32
    return %arg0, %c0_i32, %c0_i32_0 : i32, i32, i32
  }
  func.func @transform_1(%arg0: i32) -> (i32, i32) {
    %c0_i32 = arith.constant 0 : i32
    %c0_i32_0 = arith.constant 0 : i32
    %c0_i32_1 = arith.constant 0 : i32
    return %c0_i32, %c0_i32_0 : i32, i32
  }
  func.func @transform_2(%arg0: i32) -> (i32, i32) {
    %c0_i32 = arith.constant 0 : i32
    %c0_i32_0 = arith.constant 0 : i32
    %c0_i32_1 = arith.constant 0 : i32
    return %c0_i32, %c0_i32_0 : i32, i32
  }
  func.func @transform_3(%arg0: i32) -> (i32, i32) {
    %c0_i32 = arith.constant 0 : i32
    %c0_i32_0 = arith.constant 0 : i32
    %c0_i32_1 = arith.constant 0 : i32
    return %c0_i32, %c0_i32_0 : i32, i32
  }
  func.func @transform_4(%arg0: i32) -> (i32, i32, i32) {
    %c0_i32 = arith.constant 0 : i32
    %c0_i32_0 = arith.constant 0 : i32
    %c0_i32_1 = arith.constant 0 : i32
    return %arg0, %c0_i32, %c0_i32_0 : i32, i32, i32
  }
}

</mosaic_0001>

<llo_original>
// kernel: tpu_custom_call.1
$region0: #{tpu_custom_call.1}
  #allocation0 [shape = 'u32[]', space=smem, size = 0x4, offset = 0x4, fixed_abs, tag = 'smem constant byte address 0x4 - core index']
  #allocation1 [shape = 'u32[72,128]{1,0:T(1,128)}', space=vmem, size = 0x9000, scoped, tag = 'internal scratch']
  #allocation2 [shape = 'f32[8,128]{1,0:T(8,128)}', space=vmem, size = 0x1000, scoped, tag = 'scratch operand']
  #allocation3 [shape = 'f32[8,128]{1,0:T(8,128)}', space=vmem, size = 0x1000, scoped, tag = 'scratch operand']
  #allocation4 [shape = 'bf16[8,8,128]{2,1,0:T(8,128)(2,1)}', space=vmem, size = 0x4000, scoped, tag = 'scratch operand']
  %s0 = inlined_call_operand.hbm [shape: f32[8,8,512], index: 0, kind: input, shape index: {}]
  %s1 = inlined_call_operand.hbm [shape: bf16[128,512], index: 1, kind: input, shape index: {}]
  %s2 = inlined_call_operand.hbm [shape: bf16[128,128], index: 2, kind: input, shape index: {}]
  %s3 = inlined_call_operand.vmem [shape: f32[1,128], index: 3, kind: input, shape index: {}]
  %s4 = inlined_call_operand.hbm [shape: f32[8,8,128], index: 4, kind: output, shape index: {}]
  %s5 = sld [smem:[#allocation0]]
  $region42: #{tpu_custom_call.1} parent=0
    _
  %s7 = ssub.s32 1, %s5
  %s8 = scalar_select 0, %s7, %s5
  $region1: #{tpu_custom_call.1} parent=0
    #allocation5 [shape = 'u8[131072]{0}', space=vmem, size = 0x20000, scoped, tag = 'input window, operand 0, single buffered']
    #allocation6 [shape = 's32[1]{0}', space=sflag, size = 0x4, scoped, tag = 'scoped memory for tpu_custom_call.1']
    #allocation7 [shape = 's32[1]{0}', space=sflag, size = 0x4, scoped, tag = 'scoped memory for tpu_custom_call.1']
    #allocation8 [shape = 'u8[131072]{0}', space=vmem, size = 0x20000, scoped, tag = 'input window, operand 1, single buffered']
    #allocation9 [shape = 's32[1]{0}', space=sflag, size = 0x4, scoped, tag = 'scoped memory for tpu_custom_call.1']
    #allocation10 [shape = 'u8[32768]{0}', space=vmem, size = 0x8000, scoped, tag = 'input window, operand 2, single buffered']
    #allocation11 [shape = 'u8[32768]{0}', space=vmem, size = 0x8000, scoped, tag = 'output window, operand 0, single buffered']
    %9 = vsyncpa [#allocation6], 0
    %10 = vsyncpa [#allocation9], 0
    %11 = vsyncpa [#allocation7], 0
    // Predicated region
    $region2: #{tpu_custom_call.1} parent=1 // pred_check
      _
    $region3: #{tpu_custom_call.1} parent=1 // pred_check_branch
      %13 = sbr.rel (0) target = $region5
    $region4: #{tpu_custom_call.1} parent=1 // pred_region
      %15 = vsyncadd [#allocation6], 0
      %s16 = sshll.u32 %s0, 4
      %s17 = int_to_ptr.hbm [resolvable:$true] %s16
      %s18 = sshll.u32 [#allocation5], 4
      %s19 = int_to_ptr.vmem [resolvable:$true] %s18
      %24 = dma.hbm_to_vmem [thread:$0]  %s17, 4096, %s19, [#allocation6], 512, 512, 32
    $region5: #{tpu_custom_call.1} parent=1 // pred_fallthru
      _
    // Predicated region
    $region6: #{tpu_custom_call.1} parent=1 // pred_check
      _
    $region7: #{tpu_custom_call.1} parent=1 // pred_check_branch
      %26 = sbr.rel (0) target = $region9
    $region8: #{tpu_custom_call.1} parent=1 // pred_region
      %28 = vsyncadd [#allocation9], 0
      %s29 = sshll.u32 %s1, 4
      %s30 = int_to_ptr.hbm [resolvable:$true] %s29
      %s31 = sshll.u32 [#allocation8], 4
      %s32 = int_to_ptr.vmem [resolvable:$true] %s31
      %37 = dma.hbm_to_vmem [thread:$0]  %s30, 4096, %s32, [#allocation9], 256, 256, 16
    $region9: #{tpu_custom_call.1} parent=1 // pred_fallthru
      _
    // Predicated region
    $region10: #{tpu_custom_call.1} parent=1 // pred_check
      _
    $region11: #{tpu_custom_call.1} parent=1 // pred_check_branch
      %39 = sbr.rel (0) target = $region13
    $region12: #{tpu_custom_call.1} parent=1 // pred_region
      %41 = vsyncadd [#allocation9], 0
      %s42 = sshll.u32 %s2, 4
      %s43 = int_to_ptr.hbm [resolvable:$true] %s42
      %s44 = sshll.u32 [#allocation10], 4
      %s45 = int_to_ptr.vmem [resolvable:$true] %s44
      %50 = dma.hbm_to_vmem [thread:$0]  %s43, 1024, %s45, [#allocation9], 64, 64, 4
    $region13: #{tpu_custom_call.1} parent=1 // pred_fallthru
      _
    // Predicated region
    $region14: #{tpu_custom_call.1} parent=1 // pred_check
      _
    $region15: #{tpu_custom_call.1} parent=1 // pred_check_branch
      %52 = sbr.rel (0) target = $region17
    $region16: #{tpu_custom_call.1} parent=1 // pred_region
      _
    $region17: #{tpu_custom_call.1} parent=1 // pred_fallthru
      _
    // Predicated region
    $region18: #{tpu_custom_call.1} parent=1 // pred_check
      _
    $region19: #{tpu_custom_call.1} parent=1 // pred_check_branch
      %54 = sbr.rel (0) target = $region21
    $region20: #{tpu_custom_call.1} parent=1 // pred_region
      %56 = dma.done [#allocation6], 4096
    $region21: #{tpu_custom_call.1} parent=1 // pred_fallthru
      _
    // Predicated region
    $region22: #{tpu_custom_call.1} parent=1 // pred_check
      _
    $region23: #{tpu_custom_call.1} parent=1 // pred_check_branch
      %58 = sbr.rel (0) target = $region25
    $region24: #{tpu_custom_call.1} parent=1 // pred_region
      %60 = dma.done [#allocation9], 4096
    $region25: #{tpu_custom_call.1} parent=1 // pred_fallthru
      _
    // Predicated region
    $region26: #{tpu_custom_call.1} parent=1 // pred_check
      _
    $region27: #{tpu_custom_call.1} parent=1 // pred_check_branch
      %62 = sbr.rel (0) target = $region29
    $region28: #{tpu_custom_call.1} parent=1 // pred_region
      %64 = dma.done [#allocation9], 1024
    $region29: #{tpu_custom_call.1} parent=1 // pred_fallthru
      _
    %p65 = scmp.eq.s32.totalorder 0, 0
    // Predicated region
    $region30: #{tpu_custom_call.1} parent=1 // pred_check
      %p66 = pneg %p65
    $region31: #{tpu_custom_call.1} parent=1 // pred_check_branch
      %68 = sbr.rel (%p66) target = $region33
    $region32: #{tpu_custom_call.1} parent=1 // pred_region
      %69 = vst [vmem:[#allocation2] sm:$0xff] 0.0
      %70 = vst [vmem:[#allocation3] sm:$0xff] 0.0
    $region33: #{tpu_custom_call.1} parent=1 // pred_fallthru
      _
    %v71 = vld [vmem:[#allocation2] sm:$0xff]
    %v72 = vld [vmem:[#allocation3] sm:$0xff]
    %v73 = vld [vmem:[#allocation5] sm:$0xff]
    %v74 = vld [vmem:[#allocation5 + $0x8] sm:$0xff]
    %v75 = vld [vmem:[#allocation5 + $0x10] sm:$0xff]
    %v76 = vld [vmem:[#allocation5 + $0x18] sm:$0xff]
    %v77 = vpack.c.bf16 %v71, %v71
    %v78 = vld [vmem:[#allocation8] sm:$0xff]
    %v79 = vld [vmem:[#allocation8 + $0x8] sm:$0xff]
    %v80 = vld [vmem:[#allocation8 + $0x10] sm:$0xff]
    %v81 = vld [vmem:[#allocation8 + $0x18] sm:$0xff]
    %v82 = vld [vmem:[#allocation8 + $0x20] sm:$0xff]
    %v83 = vld [vmem:[#allocation8 + $0x28] sm:$0xff]
    %v84 = vld [vmem:[#allocation8 + $0x30] sm:$0xff]
    %v85 = vld [vmem:[#allocation8 + $0x38] sm:$0xff]
    %v86 = vld [vmem:[#allocation8 + $0x40] sm:$0xff]
    %v87 = vld [vmem:[#allocation8 + $0x48] sm:$0xff]
    %v88 = vld [vmem:[#allocation8 + $0x50] sm:$0xff]
    %v89 = vld [vmem:[#allocation8 + $0x58] sm:$0xff]
    %v90 = vld [vmem:[#allocation8 + $0x60] sm:$0xff]
    %v91 = vld [vmem:[#allocation8 + $0x68] sm:$0xff]
    %v92 = vld [vmem:[#allocation8 + $0x70] sm:$0xff]
    %v93 = vld [vmem:[#allocation8 + $0x78] sm:$0xff]
    %v94 = vld [vmem:[#allocation8 + $0x80] sm:$0xff]
    %v95 = vld [vmem:[#allocation8 + $0x88] sm:$0xff]
    %v96 = vld [vmem:[#allocation8 + $0x90] sm:$0xff]
    %v97 = vld [vmem:[#allocation8 + $0x98] sm:$0xff]
    %v98 = vld [vmem:[#allocation8 + $0xa0] sm:$0xff]
    %v99 = vld [vmem:[#allocation8 + $0xa8] sm:$0xff]
    %v100 = vld [vmem:[#allocation8 + $0xb0] sm:$0xff]
    %v101 = vld [vmem:[#allocation8 + $0xb8] sm:$0xff]
    %v102 = vld [vmem:[#allocation8 + $0xc0] sm:$0xff]
    %v103 = vld [vmem:[#allocation8 + $0xc8] sm:$0xff]
    %v104 = vld [vmem:[#allocation8 + $0xd0] sm:$0xff]
    %v105 = vld [vmem:[#allocation8 + $0xd8] sm:$0xff]
    %v106 = vld [vmem:[#allocation8 + $0xe0] sm:$0xff]
    %v107 = vld [vmem:[#allocation8 + $0xe8] sm:$0xff]
    %v108 = vld [vmem:[#allocation8 + $0xf0] sm:$0xff]
    %v109 = vld [vmem:[#allocation8 + $0xf8] sm:$0xff]
    %v142 = vunpack.c.l.b16 %v78
    %v143 = vunpack.c.h.b16 %v78
    %v144 = vunpack.c.l.b16 %v79
    %v145 = vunpack.c.h.b16 %v79
    %v146 = vunpack.c.l.b16 %v80
    %v147 = vunpack.c.h.b16 %v80
    %v148 = vunpack.c.l.b16 %v81
    %v149 = vunpack.c.h.b16 %v81
    %v150 = vunpack.c.l.b16 %v82
    %v151 = vunpack.c.h.b16 %v82
    %v152 = vunpack.c.l.b16 %v83
    %v153 = vunpack.c.h.b16 %v83
    %v154 = vunpack.c.l.b16 %v84
    %v155 = vunpack.c.h.b16 %v84
    %v156 = vunpack.c.l.b16 %v85
    %v157 = vunpack.c.h.b16 %v85
    %v158 = vunpack.c.l.b16 %v86
    %v159 = vunpack.c.h.b16 %v86
    %v160 = vunpack.c.l.b16 %v87
    %v161 = vunpack.c.h.b16 %v87
    %v162 = vunpack.c.l.b16 %v88
    %v163 = vunpack.c.h.b16 %v88
    %v164 = vunpack.c.l.b16 %v89
    %v165 = vunpack.c.h.b16 %v89
    %v166 = vunpack.c.l.b16 %v90
    %v167 = vunpack.c.h.b16 %v90
    %v168 = vunpack.c.l.b16 %v91
    %v169 = vunpack.c.h.b16 %v91
    %v170 = vunpack.c.l.b16 %v92
    %v171 = vunpack.c.h.b16 %v92
    %v172 = vunpack.c.l.b16 %v93
    %v173 = vunpack.c.h.b16 %v93
    %v174 = vunpack.c.l.b16 %v94
    %v175 = vunpack.c.h.b16 %v94
    %v176 = vunpack.c.l.b16 %v95
    %v177 = vunpack.c.h.b16 %v95
    %v178 = vunpack.c.l.b16 %v96
    %v179 = vunpack.c.h.b16 %v96
    %v180 = vunpack.c.l.b16 %v97
    %v181 = vunpack.c.h.b16 %v97
    %v182 = vunpack.c.l.b16 %v98
    %v183 = vunpack.c.h.b16 %v98
    %v184 = vunpack.c.l.b16 %v99
    %v185 = vunpack.c.h.b16 %v99
    %v186 = vunpack.c.l.b16 %v100
    %v187 = vunpack.c.h.b16 %v100
    %v188 = vunpack.c.l.b16 %v101
    %v189 = vunpack.c.h.b16 %v101
    %v190 = vunpack.c.l.b16 %v102
    %v191 = vunpack.c.h.b16 %v102
    %v192 = vunpack.c.l.b16 %v103
    %v193 = vunpack.c.h.b16 %v103
    %v194 = vunpack.c.l.b16 %v104
    %v195 = vunpack.c.h.b16 %v104
    %v196 = vunpack.c.l.b16 %v105
    %v197 = vunpack.c.h.b16 %v105
    %v198 = vunpack.c.l.b16 %v106
    %v199 = vunpack.c.h.b16 %v106
    %v200 = vunpack.c.l.b16 %v107
    %v201 = vunpack.c.h.b16 %v107
    %v202 = vunpack.c.l.b16 %v108
    %v203 = vunpack.c.h.b16 %v108
    %v204 = vunpack.c.l.b16 %v109
    %v205 = vunpack.c.h.b16 %v109
    %v206 = vpack.c.b16 %v146, %v142
    %v207 = vpack.c.b16 %v147, %v143
    %v208 = vpack.c.b16 %v148, %v144
    %v209 = vpack.c.b16 %v149, %v145
    %v210 = vpack.c.b16 %v154, %v150
    %v211 = vpack.c.b16 %v155, %v151
    %v212 = vpack.c.b16 %v156, %v152
    %v213 = vpack.c.b16 %v157, %v153
    %v214 = vpack.c.b16 %v162, %v158
    %v215 = vpack.c.b16 %v163, %v159
    %v216 = vpack.c.b16 %v164, %v160
    %v217 = vpack.c.b16 %v165, %v161
    %v218 = vpack.c.b16 %v170, %v166
    %v219 = vpack.c.b16 %v171, %v167
    %v220 = vpack.c.b16 %v172, %v168
    %v221 = vpack.c.b16 %v173, %v169
    %v222 = vpack.c.b16 %v178, %v174
    %v223 = vpack.c.b16 %v179, %v175
    %v224 = vpack.c.b16 %v180, %v176
    %v225 = vpack.c.b16 %v181, %v177
    %v226 = vpack.c.b16 %v186, %v182
    %v227 = vpack.c.b16 %v187, %v183
    %v228 = vpack.c.b16 %v188, %v184
    %v229 = vpack.c.b16 %v189, %v185
    %v230 = vpack.c.b16 %v194, %v190
    %v231 = vpack.c.b16 %v195, %v191
    %v232 = vpack.c.b16 %v196, %v192
    %v233 = vpack.c.b16 %v197, %v193
    %v234 = vpack.c.b16 %v202, %v198
    %v235 = vpack.c.b16 %v203, %v199
    %v236 = vpack.c.b16 %v204, %v200
    %v237 = vpack.c.b16 %v205, %v201
    %270 = vmatpush.bf16.msra.mxu0 %v234
    %271 = vmatpush.bf16.msra.mxu0 %v230
    %272 = vmatpush.bf16.msra.mxu0 %v226
    %273 = vmatpush.bf16.msra.mxu0 %v222
    %274 = vmatpush.bf16.msra.mxu0 %v218
    %275 = vmatpush.bf16.msra.mxu0 %v214
    %276 = vmatpush.bf16.msra.mxu0 %v210
    %277 = vmatpush.bf16.msra.mxu0 %v206
    %278 = vmatmul.bf16.gmra.mxu0 %v77
    %v279 = vpop.f32.mrf.mxu0
    %v280 = vadd.f32 0.0, %v279
    %v281 = vpop.f32.mrf.mxu0
    %282 = vdwg.mxu0
    %283 = vmatpush.bf16.msra.mxu0 %v235
    %284 = vmatpush.bf16.msra.mxu0 %v231
    %285 = vmatpush.bf16.msra.mxu0 %v227
    %286 = vmatpush.bf16.msra.mxu0 %v223
    %287 = vmatpush.bf16.msra.mxu0 %v219
    %288 = vmatpush.bf16.msra.mxu0 %v215
    %289 = vmatpush.bf16.msra.mxu0 %v211
    %290 = vmatpush.bf16.msra.mxu0 %v207
    %291 = vmatmul.bf16.gmra.mxu0 %v77
    %v292 = vpop.f32.mrf.mxu0
    %v293 = vadd.f32 0.0, %v292
    %v294 = vpop.f32.mrf.mxu0
    %295 = vdwg.mxu0
    %296 = vmatpush.bf16.msra.mxu0 %v236
    %297 = vmatpush.bf16.msra.mxu0 %v232
    %298 = vmatpush.bf16.msra.mxu0 %v228
    %299 = vmatpush.bf16.msra.mxu0 %v224
    %300 = vmatpush.bf16.msra.mxu0 %v220
    %301 = vmatpush.bf16.msra.mxu0 %v216
    %302 = vmatpush.bf16.msra.mxu0 %v212
    %303 = vmatpush.bf16.msra.mxu0 %v208
    %304 = vmatmul.bf16.gmra.mxu0 %v77
    %v305 = vpop.f32.mrf.mxu0
    %v306 = vadd.f32 0.0, %v305
    %v307 = vpop.f32.mrf.mxu0
    %308 = vdwg.mxu0
    %309 = vmatpush.bf16.msra.mxu0 %v237
    %310 = vmatpush.bf16.msra.mxu0 %v233
    %311 = vmatpush.bf16.msra.mxu0 %v229
    %312 = vmatpush.bf16.msra.mxu0 %v225
    %313 = vmatpush.bf16.msra.mxu0 %v221
    %314 = vmatpush.bf16.msra.mxu0 %v217
    %315 = vmatpush.bf16.msra.mxu0 %v213
    %316 = vmatpush.bf16.msra.mxu0 %v209
    %317 = vmatmul.bf16.gmra.mxu0 %v77
    %v318 = vpop.f32.mrf.mxu0
    %v319 = vadd.f32 0.0, %v318
    %v320 = vpop.f32.mrf.mxu0
    %321 = vdwg.mxu0
    %v322 = vadd.f32 %v73, %v280
    %v323 = vadd.f32 %v74, %v293
    %v324 = vadd.f32 %v75, %v306
    %v325 = vadd.f32 %v76, %v319
    %v326 = vxor.u32 %v322, 2147483648
    %v327 = vmul.f32 %v326, 1.442695
    %v328 = vpow.pop %v327
    %v329 = vadd.f32 %v328, 1.0
    %v330 = vrcp.pop %v329
    %v331 = vmul.f32 %v329, %v330
    %v332 = vsub.f32 1.0, %v331
    %v333 = vmul.f32 %v330, %v332
    %v334 = vadd.f32 %v330, %v333
    %vm335 = vweird.f32 %v329
    %vm336 = vweird.f32 %v330
    %vm337 = vmor %vm335, %vm336
    %v338 = vsel %vm337, %v330, %v334
    %v339 = vand.u32 2147483647, %v329
    %vm340 = vcmp.eq.f32.partialorder %v339, 8.507059e+37
    %v341 = vand.u32 %v329, 2147483648
    %v342 = vor.u32 1.1754944e-38, %v341
    %v343 = vsel %vm340, %v342, %v338
    %v344 = vmul.f32 1.0, %v343
    %v345 = vxor.u32 %v323, 2147483648
    %v346 = vmul.f32 %v345, 1.442695
    %v347 = vpow.pop %v346
    %v348 = vadd.f32 %v347, 1.0
    %v349 = vrcp.pop %v348
    %v350 = vmul.f32 %v348, %v349
    %v351 = vsub.f32 1.0, %v350
    %v352 = vmul.f32 %v349, %v351
    %v353 = vadd.f32 %v349, %v352
    %vm354 = vweird.f32 %v348
    %vm355 = vweird.f32 %v349
    %vm356 = vmor %vm354, %vm355
    %v357 = vsel %vm356, %v349, %v353
    %v358 = vand.u32 2147483647, %v348
    %vm359 = vcmp.eq.f32.partialorder %v358, 8.507059e+37
    %v360 = vand.u32 %v348, 2147483648
    %v361 = vor.u32 1.1754944e-38, %v360
    %v362 = vsel %vm359, %v361, %v357
    %v363 = vmul.f32 1.0, %v362
    %v364 = vtanh.pop %v324
    %v365 = vxor.u32 %v325, 2147483648
    %v366 = vmul.f32 %v365, 1.442695
    %v367 = vpow.pop %v366
    %v368 = vadd.f32 %v367, 1.0
    %v369 = vrcp.pop %v368
    %v370 = vmul.f32 %v368, %v369
    %v371 = vsub.f32 1.0, %v370
    %v372 = vmul.f32 %v369, %v371
    %v373 = vadd.f32 %v369, %v372
    %vm374 = vweird.f32 %v368
    %vm375 = vweird.f32 %v369
    %vm376 = vmor %vm374, %vm375
    %v377 = vsel %vm376, %v369, %v373
    %v378 = vand.u32 2147483647, %v368
    %vm379 = vcmp.eq.f32.partialorder %v378, 8.507059e+37
    %v380 = vand.u32 %v368, 2147483648
    %v381 = vor.u32 1.1754944e-38, %v380
    %v382 = vsel %vm379, %v381, %v377
    %v383 = vmul.f32 1.0, %v382
    %v384 = vmul.f32 %v363, %v72
    %v385 = vmul.f32 %v344, %v364
    %v386 = vadd.f32 %v384, %v385
    %v387 = vtanh.pop %v386
    %v388 = vmul.f32 %v383, %v387
    %v389 = vpack.c.bf16 %v388, %v388
    %390 = vst [vmem:[#allocation4] sm:$0xf] %v389
    %s391 = scalar_lea.vmem [#allocation5], 32
    %v392 = vld [vmem:[%s391] sm:$0xff]
    %v393 = vld [vmem:[%s391 + $0x8] sm:$0xff]
    %v394 = vld [vmem:[%s391 + $0x10] sm:$0xff]
    %v395 = vld [vmem:[%s391 + $0x18] sm:$0xff]
    %v396 = vld [vmem:[#allocation8] sm:$0xff]
    %v397 = vld [vmem:[#allocation8 + $0x8] sm:$0xff]
    %v398 = vld [vmem:[#allocation8 + $0x10] sm:$0xff]
    %v399 = vld [vmem:[#allocation8 + $0x18] sm:$0xff]
    %v400 = vld [vmem:[#allocation8 + $0x20] sm:$0xff]
    %v401 = vld [vmem:[#allocation8 + $0x28] sm:$0xff]
    %v402 = vld [vmem:[#allocation8 + $0x30] sm:$0xff]
    %v403 = vld [vmem:[#allocation8 + $0x38] sm:$0xff]
    %v404 = vld [vmem:[#allocation8 + $0x40] sm:$0xff]
    %v405 = vld [vmem:[#allocation8 + $0x48] sm:$0xff]
    %v406 = vld [vmem:[#allocation8 + $0x50] sm:$0xff]
    %v407 = vld [vmem:[#allocation8 + $0x58] sm:$0xff]
    %v408 = vld [vmem:[#allocation8 + $0x60] sm:$0xff]
    %v409 = vld [vmem:[#allocation8 + $0x68] sm:$0xff]
    %v410 = vld [vmem:[#allocation8 + $0x70] sm:$0xff]
    %v411 = vld [vmem:[#allocation8 + $0x78] sm:$0xff]
    %v412 = vld [vmem:[#allocation8 + $0x80] sm:$0xff]
    %v413 = vld [vmem:[#allocation8 + $0x88] sm:$0xff]
    %v414 = vld [vmem:[#allocation8 + $0x90] sm:$0xff]
    %v415 = vld [vmem:[#allocation8 + $0x98] sm:$0xff]
    %v416 = vld [vmem:[#allocation8 + $0xa0] sm:$0xff]
    %v417 = vld [vmem:[#allocation8 + $0xa8] sm:$0xff]
    %v418 = vld [vmem:[#allocation8 + $0xb0] sm:$0xff]
    %v419 = vld [vmem:[#allocation8 + $0xb8] sm:$0xff]
    %v420 = vld [vmem:[#allocation8 + $0xc0] sm:$0xff]
    %v421 = vld [vmem:[#allocation8 + $0xc8] sm:$0xff]
    %v422 = vld [vmem:[#allocation8 + $0xd0] sm:$0xff]
    %v423 = vld [vmem:[#allocation8 + $0xd8] sm:$0xff]
    %v424 = vld [vmem:[#allocation8 + $0xe0] sm:$0xff]
    %v425 = vld [vmem:[#allocation8 + $0xe8] sm:$0xff]
    %v426 = vld [vmem:[#allocation8 + $0xf0] sm:$0xff]
    %v427 = vld [vmem:[#allocation8 + $0xf8] sm:$0xff]
    %v460 = vunpack.c.l.b16 %v396
    %v461 = vunpack.c.h.b16 %v396
    %v462 = vunpack.c.l.b16 %v397
    %v463 = vunpack.c.h.b16 %v397
    %v464 = vunpack.c.l.b16 %v398
    %v465 = vunpack.c.h.b16 %v398
    %v466 = vunpack.c.l.b16 %v399
    %v467 = vunpack.c.h.b16 %v399
    %v468 = vunpack.c.l.b16 %v400
    %v469 = vunpack.c.h.b16 %v400
    %v470 = vunpack.c.l.b16 %v401
    %v471 = vunpack.c.h.b16 %v401
    %v472 = vunpack.c.l.b16 %v402
    %v473 = vunpack.c.h.b16 %v402
    %v474 = vunpack.c.l.b16 %v403
    %v475 = vunpack.c.h.b16 %v403
    %v476 = vunpack.c.l.b16 %v404
    %v477 = vunpack.c.h.b16 %v404
    %v478 = vunpack.c.l.b16 %v405
    %v479 = vunpack.c.h.b16 %v405
    %v480 = vunpack.c.l.b16 %v406
    %v481 = vunpack.c.h.b16 %v406
    %v482 = vunpack.c.l.b16 %v407
    %v483 = vunpack.c.h.b16 %v407
    %v484 = vunpack.c.l.b16 %v408
    %v485 = vunpack.c.h.b16 %v408
    %v486 = vunpack.c.l.b16 %v409
    %v487 = vunpack.c.h.b16 %v409
    %v488 = vunpack.c.l.b16 %v410
    %v489 = vunpack.c.h.b16 %v410
    %v490 = vunpack.c.l.b16 %v411
    %v491 = vunpack.c.h.b16 %v411
    %v492 = vunpack.c.l.b16 %v412
    %v493 = vunpack.c.h.b16 %v412
    %v494 = vunpack.c.l.b16 %v413
    %v495 = vunpack.c.h.b16 %v413
    %v496 = vunpack.c.l.b16 %v414
    %v497 = vunpack.c.h.b16 %v414
    %v498 = vunpack.c.l.b16 %v415
    %v499 = vunpack.c.h.b16 %v415
    %v500 = vunpack.c.l.b16 %v416
    %v501 = vunpack.c.h.b16 %v416
    %v502 = vunpack.c.l.b16 %v417
    %v503 = vunpack.c.h.b16 %v417
    %v504 = vunpack.c.l.b16 %v418
    %v505 = vunpack.c.h.b16 %v418
    %v506 = vunpack.c.l.b16 %v419
    %v507 = vunpack.c.h.b16 %v419
    %v508 = vunpack.c.l.b16 %v420
    %v509 = vunpack.c.h.b16 %v420
    %v510 = vunpack.c.l.b16 %v421
    %v511 = vunpack.c.h.b16 %v421
    %v512 = vunpack.c.l.b16 %v422
    %v513 = vunpack.c.h.b16 %v422
    %v514 = vunpack.c.l.b16 %v423
    %v515 = vunpack.c.h.b16 %v423
    %v516 = vunpack.c.l.b16 %v424
    %v517 = vunpack.c.h.b16 %v424
    %v518 = vunpack.c.l.b16 %v425
    %v519 = vunpack.c.h.b16 %v425
    %v520 = vunpack.c.l.b16 %v426
    %v521 = vunpack.c.h.b16 %v426
    %v522 = vunpack.c.l.b16 %v427
    %v523 = vunpack.c.h.b16 %v427
    %v524 = vpack.c.b16 %v464, %v460
    %v525 = vpack.c.b16 %v465, %v461
    %v526 = vpack.c.b16 %v466, %v462
    %v527 = vpack.c.b16 %v467, %v463
    %v528 = vpack.c.b16 %v472, %v468
    %v529 = vpack.c.b16 %v473, %v469
    %v530 = vpack.c.b16 %v474, %v470
    %v531 = vpack.c.b16 %v475, %v471
    %v532 = vpack.c.b16 %v480, %v476
    %v533 = vpack.c.b16 %v481, %v477
    %v534 = vpack.c.b16 %v482, %v478
    %v535 = vpack.c.b16 %v483, %v479
    %v536 = vpack.c.b16 %v488, %v484
    %v537 = vpack.c.b16 %v489, %v485
    %v538 = vpack.c.b16 %v490, %v486
    %v539 = vpack.c.b16 %v491, %v487
    %v540 = vpack.c.b16 %v496, %v492
    %v541 = vpack.c.b16 %v497, %v493
    %v542 = vpack.c.b16 %v498, %v494
    %v543 = vpack.c.b16 %v499, %v495
    %v544 = vpack.c.b16 %v504, %v500
    %v545 = vpack.c.b16 %v505, %v501
    %v546 = vpack.c.b16 %v506, %v502
    %v547 = vpack.c.b16 %v507, %v503
    %v548 = vpack.c.b16 %v512, %v508
    %v549 = vpack.c.b16 %v513, %v509
    %v550 = vpack.c.b16 %v514, %v510
    %v551 = vpack.c.b16 %v515, %v511
    %v552 = vpack.c.b16 %v520, %v516
    %v553 = vpack.c.b16 %v521, %v517
    %v554 = vpack.c.b16 %v522, %v518
    %v555 = vpack.c.b16 %v523, %v519
    %588 = vmatpush.bf16.msra.mxu0 %v552
    %589 = vmatpush.bf16.msra.mxu0 %v548
    %590 = vmatpush.bf16.msra.mxu0 %v544
    %591 = vmatpush.bf16.msra.mxu0 %v540
    %592 = vmatpush.bf16.msra.mxu0 %v536
    %593 = vmatpush.bf16.msra.mxu0 %v532
    %594 = vmatpush.bf16.msra.mxu0 %v528
    %595 = vmatpush.bf16.msra.mxu0 %v524
    %596 = vmatmul.bf16.gmra.mxu0 %v389
    %v597 = vpop.f32.mrf.mxu0
    %v598 = vadd.f32 0.0, %v597
    %v599 = vpop.f32.mrf.mxu0
    %600 = vdwg.mxu0
    %601 = vmatpush.bf16.msra.mxu0 %v553
    %602 = vmatpush.bf16.msra.mxu0 %v549
    %603 = vmatpush.bf16.msra.mxu0 %v545
    %604 = vmatpush.bf16.msra.mxu0 %v541
    %605 = vmatpush.bf16.msra.mxu0 %v537
    %606 = vmatpush.bf16.msra.mxu0 %v533
    %607 = vmatpush.bf16.msra.mxu0 %v529
    %608 = vmatpush.bf16.msra.mxu0 %v525
    %609 = vmatmul.bf16.gmra.mxu0 %v389
    %v610 = vpop.f32.mrf.mxu0
    %v611 = vadd.f32 0.0, %v610
    %v612 = vpop.f32.mrf.mxu0
    %613 = vdwg.mxu0
    %614 = vmatpush.bf16.msra.mxu0 %v554
    %615 = vmatpush.bf16.msra.mxu0 %v550
    %616 = vmatpush.bf16.msra.mxu0 %v546
    %617 = vmatpush.bf16.msra.mxu0 %v542
    %618 = vmatpush.bf16.msra.mxu0 %v538
    %619 = vmatpush.bf16.msra.mxu0 %v534
    %620 = vmatpush.bf16.msra.mxu0 %v530
    %621 = vmatpush.bf16.msra.mxu0 %v526
    %622 = vmatmul.bf16.gmra.mxu0 %v389
    %v623 = vpop.f32.mrf.mxu0
    %v624 = vadd.f32 0.0, %v623
    %v625 = vpop.f32.mrf.mxu0
    %626 = vdwg.mxu0
    %627 = vmatpush.bf16.msra.mxu0 %v555
    %628 = vmatpush.bf16.msra.mxu0 %v551
    %629 = vmatpush.bf16.msra.mxu0 %v547
    %630 = vmatpush.bf16.msra.mxu0 %v543
    %631 = vmatpush.bf16.msra.mxu0 %v539
    %632 = vmatpush.bf16.msra.mxu0 %v535
    %633 = vmatpush.bf16.msra.mxu0 %v531
    %634 = vmatpush.bf16.msra.mxu0 %v527
    %635 = vmatmul.bf16.gmra.mxu0 %v389
    %v636 = vpop.f32.mrf.mxu0
    %v637 = vadd.f32 0.0, %v636
    %v638 = vpop.f32.mrf.mxu0
    %639 = vdwg.mxu0
    %v640 = vadd.f32 %v392, %v598
    %v641 = vadd.f32 %v393, %v611
    %v642 = vadd.f32 %v394, %v624
    %v643 = vadd.f32 %v395, %v637
    %v644 = vxor.u32 %v640, 2147483648
    %v645 = vmul.f32 %v644, 1.442695
    %v646 = vpow.pop %v645
    %v647 = vadd.f32 %v646, 1.0
    %v648 = vrcp.pop %v647
    %v649 = vmul.f32 %v647, %v648
    %v650 = vsub.f32 1.0, %v649
    %v651 = vmul.f32 %v648, %v650
    %v652 = vadd.f32 %v648, %v651
    %vm653 = vweird.f32 %v647
    %vm654 = vweird.f32 %v648
    %vm655 = vmor %vm653, %vm654
    %v656 = vsel %vm655, %v648, %v652
    %v657 = vand.u32 2147483647, %v647
    %vm658 = vcmp.eq.f32.partialorder %v657, 8.507059e+37
    %v659 = vand.u32 %v647, 2147483648
    %v660 = vor.u32 1.1754944e-38, %v659
    %v661 = vsel %vm658, %v660, %v656
    %v662 = vmul.f32 1.0, %v661
    %v663 = vxor.u32 %v641, 2147483648
    %v664 = vmul.f32 %v663, 1.442695
    %v665 = vpow.pop %v664
    %v666 = vadd.f32 %v665, 1.0
    %v667 = vrcp.pop %v666
    %v668 = vmul.f32 %v666, %v667
    %v669 = vsub.f32 1.0, %v668
    %v670 = vmul.f32 %v667, %v669
    %v671 = vadd.f32 %v667, %v670
    %vm672 = vweird.f32 %v666
    %vm673 = vweird.f32 %v667
    %vm674 = vmor %vm672, %vm673
    %v675 = vsel %vm674, %v667, %v671
    %v676 = vand.u32 2147483647, %v666
    %vm677 = vcmp.eq.f32.partialorder %v676, 8.507059e+37
    %v678 = vand.u32 %v666, 2147483648
    %v679 = vor.u32 1.1754944e-38, %v678
    %v680 = vsel %vm677, %v679, %v675
    %v681 = vmul.f32 1.0, %v680
    %v682 = vtanh.pop %v642
    %v683 = vxor.u32 %v643, 2147483648
    %v684 = vmul.f32 %v683, 1.442695
    %v685 = vpow.pop %v684
    %v686 = vadd.f32 %v685, 1.0
    %v687 = vrcp.pop %v686
    %v688 = vmul.f32 %v686, %v687
    %v689 = vsub.f32 1.0, %v688
    %v690 = vmul.f32 %v687, %v689
    %v691 = vadd.f32 %v687, %v690
    %vm692 = vweird.f32 %v686
    %vm693 = vweird.f32 %v687
    %vm694 = vmor %vm692, %vm693
    %v695 = vsel %vm694, %v687, %v691
    %v696 = vand.u32 2147483647, %v686
    %vm697 = vcmp.eq.f32.partialorder %v696, 8.507059e+37
    %v698 = vand.u32 %v686, 2147483648
    %v699 = vor.u32 1.1754944e-38, %v698
    %v700 = vsel %vm697, %v699, %v695
    %v701 = vmul.f32 1.0, %v700
    %v702 = vmul.f32 %v681, %v386
    %v703 = vmul.f32 %v662, %v682
    %v704 = vadd.f32 %v702, %v703
    %v705 = vtanh.pop %v704
    %v706 = vmul.f32 %v701, %v705
    %v707 = vpack.c.bf16 %v706, %v706
    %s708 = scalar_lea.vmem [#allocation4], 4
    %709 = vst [vmem:[%s708] sm:$0xf] %v707
    %s710 = scalar_lea.vmem [#allocation5], 64
    %v711 = vld [vmem:[%s710] sm:$0xff]
    %v712 = vld [vmem:[%s710 + $0x8] sm:$0xff]
    %v713 = vld [vmem:[%s710 + $0x10] sm:$0xff]
    %v714 = vld [vmem:[%s710 + $0x18] sm:$0xff]
    %v715 = vld [vmem:[#allocation8] sm:$0xff]
    %v716 = vld [vmem:[#allocation8 + $0x8] sm:$0xff]
    %v717 = vld [vmem:[#allocation8 + $0x10] sm:$0xff]
    %v718 = vld [vmem:[#allocation8 + $0x18] sm:$0xff]
    %v719 = vld [vmem:[#allocation8 + $0x20] sm:$0xff]
    %v720 = vld [vmem:[#allocation8 + $0x28] sm:$0xff]
    %v721 = vld [vmem:[#allocation8 + $0x30] sm:$0xff]
    %v722 = vld [vmem:[#allocation8 + $0x38] sm:$0xff]
    %v723 = vld [vmem:[#allocation8 + $0x40] sm:$0xff]
    %v724 = vld [vmem:[#allocation8 + $0x48] sm:$0xff]
    %v725 = vld [vmem:[#allocation8 + $0x50] sm:$0xff]
    %v726 = vld [vmem:[#allocation8 + $0x58] sm:$0xff]
    %v727 = vld [vmem:[#allocation8 + $0x60] sm:$0xff]
    %v728 = vld [vmem:[#allocation8 + $0x68] sm:$0xff]
    %v729 = vld [vmem:[#allocation8 + $0x70] sm:$0xff]
    %v730 = vld [vmem:[#allocation8 + $0x78] sm:$0xff]
    %v731 = vld [vmem:[#allocation8 + $0x80] sm:$0xff]
    %v732 = vld [vmem:[#allocation8 + $0x88] sm:$0xff]
    %v733 = vld [vmem:[#allocation8 + $0x90] sm:$0xff]
    %v734 = vld [vmem:[#allocation8 + $0x98] sm:$0xff]
    %v735 = vld [vmem:[#allocation8 + $0xa0] sm:$0xff]
    %v736 = vld [vmem:[#allocation8 + $0xa8] sm:$0xff]
    %v737 = vld [vmem:[#allocation8 + $0xb0] sm:$0xff]
    %v738 = vld [vmem:[#allocation8 + $0xb8] sm:$0xff]
    %v739 = vld [vmem:[#allocation8 + $0xc0] sm:$0xff]
    %v740 = vld [vmem:[#allocation8 + $0xc8] sm:$0xff]
    %v741 = vld [vmem:[#allocation8 + $0xd0] sm:$0xff]
    %v742 = vld [vmem:[#allocation8 + $0xd8] sm:$0xff]
    %v743 = vld [vmem:[#allocation8 + $0xe0] sm:$0xff]
    %v744 = vld [vmem:[#allocation8 + $0xe8] sm:$0xff]
    %v745 = vld [vmem:[#allocation8 + $0xf0] sm:$0xff]
    %v746 = vld [vmem:[#allocation8 + $0xf8] sm:$0xff]
    %v779 = vunpack.c.l.b16 %v715
    %v780 = vunpack.c.h.b16 %v715
    %v781 = vunpack.c.l.b16 %v716
    %v782 = vunpack.c.h.b16 %v716
    %v783 = vunpack.c.l.b16 %v717
    %v784 = vunpack.c.h.b16 %v717
    %v785 = vunpack.c.l.b16 %v718
    %v786 = vunpack.c.h.b16 %v718
    %v787 = vunpack.c.l.b16 %v719
    %v788 = vunpack.c.h.b16 %v719
    %v789 = vunpack.c.l.b16 %v720
    %v790 = vunpack.c.h.b16 %v720
    %v791 = vunpack.c.l.b16 %v721
    %v792 = vunpack.c.h.b16 %v721
    %v793 = vunpack.c.l.b16 %v722
    %v794 = vunpack.c.h.b16 %v722
    %v795 = vunpack.c.l.b16 %v723
    %v796 = vunpack.c.h.b16 %v723
    %v797 = vunpack.c.l.b16 %v724
    %v798 = vunpack.c.h.b16 %v724
    %v799 = vunpack.c.l.b16 %v725
    %v800 = vunpack.c.h.b16 %v725
    %v801 = vunpack.c.l.b16 %v726
    %v802 = vunpack.c.h.b16 %v726
    %v803 = vunpack.c.l.b16 %v727
    %v804 = vunpack.c.h.b16 %v727
    %v805 = vunpack.c.l.b16 %v728
    %v806 = vunpack.c.h.b16 %v728
    %v807 = vunpack.c.l.b16 %v729
    %v808 = vunpack.c.h.b16 %v729
    %v809 = vunpack.c.l.b16 %v730
    %v810 = vunpack.c.h.b16 %v730
    %v811 = vunpack.c.l.b16 %v731
    %v812 = vunpack.c.h.b16 %v731
    %v813 = vunpack.c.l.b16 %v732
    %v814 = vunpack.c.h.b16 %v732
    %v815 = vunpack.c.l.b16 %v733
    %v816 = vunpack.c.h.b16 %v733
    %v817 = vunpack.c.l.b16 %v734
    %v818 = vunpack.c.h.b16 %v734
    %v819 = vunpack.c.l.b16 %v735
    %v820 = vunpack.c.h.b16 %v735
    %v821 = vunpack.c.l.b16 %v736
    %v822 = vunpack.c.h.b16 %v736
    %v823 = vunpack.c.l.b16 %v737
    %v824 = vunpack.c.h.b16 %v737
    %v825 = vunpack.c.l.b16 %v738
    %v826 = vunpack.c.h.b16 %v738
    %v827 = vunpack.c.l.b16 %v739
    %v828 = vunpack.c.h.b16 %v739
    %v829 = vunpack.c.l.b16 %v740
    %v830 = vunpack.c.h.b16 %v740
    %v831 = vunpack.c.l.b16 %v741
    %v832 = vunpack.c.h.b16 %v741
    %v833 = vunpack.c.l.b16 %v742
    %v834 = vunpack.c.h.b16 %v742
    %v835 = vunpack.c.l.b16 %v743
    %v836 = vunpack.c.h.b16 %v743
    %v837 = vunpack.c.l.b16 %v744
    %v838 = vunpack.c.h.b16 %v744
    %v839 = vunpack.c.l.b16 %v745
    %v840 = vunpack.c.h.b16 %v745
    %v841 = vunpack.c.l.b16 %v746
    %v842 = vunpack.c.h.b16 %v746
    %v843 = vpack.c.b16 %v783, %v779
    %v844 = vpack.c.b16 %v784, %v780
    %v845 = vpack.c.b16 %v785, %v781
    %v846 = vpack.c.b16 %v786, %v782
    %v847 = vpack.c.b16 %v791, %v787
    %v848 = vpack.c.b16 %v792, %v788
    %v849 = vpack.c.b16 %v793, %v789
    %v850 = vpack.c.b16 %v794, %v790
    %v851 = vpack.c.b16 %v799, %v795
    %v852 = vpack.c.b16 %v800, %v796
    %v853 = vpack.c.b16 %v801, %v797
    %v854 = vpack.c.b16 %v802, %v798
    %v855 = vpack.c.b16 %v807, %v803
    %v856 = vpack.c.b16 %v808, %v804
    %v857 = vpack.c.b16 %v809, %v805
    %v858 = vpack.c.b16 %v810, %v806
    %v859 = vpack.c.b16 %v815, %v811
    %v860 = vpack.c.b16 %v816, %v812
    %v861 = vpack.c.b16 %v817, %v813
    %v862 = vpack.c.b16 %v818, %v814
    %v863 = vpack.c.b16 %v823, %v819
    %v864 = vpack.c.b16 %v824, %v820
    %v865 = vpack.c.b16 %v825, %v821
    %v866 = vpack.c.b16 %v826, %v822
    %v867 = vpack.c.b16 %v831, %v827
    %v868 = vpack.c.b16 %v832, %v828
    %v869 = vpack.c.b16 %v833, %v829
    %v870 = vpack.c.b16 %v834, %v830
    %v871 = vpack.c.b16 %v839, %v835
    %v872 = vpack.c.b16 %v840, %v836
    %v873 = vpack.c.b16 %v841, %v837
    %v874 = vpack.c.b16 %v842, %v838
    %907 = vmatpush.bf16.msra.mxu0 %v871
    %908 = vmatpush.bf16.msra.mxu0 %v867
    %909 = vmatpush.bf16.msra.mxu0 %v863
    %910 = vmatpush.bf16.msra.mxu0 %v859
    %911 = vmatpush.bf16.msra.mxu0 %v855
    %912 = vmatpush.bf16.msra.mxu0 %v851
    %913 = vmatpush.bf16.msra.mxu0 %v847
    %914 = vmatpush.bf16.msra.mxu0 %v843
    %915 = vmatmul.bf16.gmra.mxu0 %v707
    %v916 = vpop.f32.mrf.mxu0
    %v917 = vadd.f32 0.0, %v916
    %v918 = vpop.f32.mrf.mxu0
    %919 = vdwg.mxu0
    %920 = vmatpush.bf16.msra.mxu0 %v872
    %921 = vmatpush.bf16.msra.mxu0 %v868
    %922 = vmatpush.bf16.msra.mxu0 %v864
    %923 = vmatpush.bf16.msra.mxu0 %v860
    %924 = vmatpush.bf16.msra.mxu0 %v856
    %925 = vmatpush.bf16.msra.mxu0 %v852
    %926 = vmatpush.bf16.msra.mxu0 %v848
    %927 = vmatpush.bf16.msra.mxu0 %v844
    %928 = vmatmul.bf16.gmra.mxu0 %v707
    %v929 = vpop.f32.mrf.mxu0
    %v930 = vadd.f32 0.0, %v929
    %v931 = vpop.f32.mrf.mxu0
    %932 = vdwg.mxu0
    %933 = vmatpush.bf16.msra.mxu0 %v873
    %934 = vmatpush.bf16.msra.mxu0 %v869
    %935 = vmatpush.bf16.msra.mxu0 %v865
    %936 = vmatpush.bf16.msra.mxu0 %v861
    %937 = vmatpush.bf16.msra.mxu0 %v857
    %938 = vmatpush.bf16.msra.mxu0 %v853
    %939 = vmatpush.bf16.msra.mxu0 %v849
    %940 = vmatpush.bf16.msra.mxu0 %v845
    %941 = vmatmul.bf16.gmra.mxu0 %v707
    %v942 = vpop.f32.mrf.mxu0
    %v943 = vadd.f32 0.0, %v942
    %v944 = vpop.f32.mrf.mxu0
    %945 = vdwg.mxu0
    %946 = vmatpush.bf16.msra.mxu0 %v874
    %947 = vmatpush.bf16.msra.mxu0 %v870
    %948 = vmatpush.bf16.msra.mxu0 %v866
    %949 = vmatpush.bf16.msra.mxu0 %v862
    %950 = vmatpush.bf16.msra.mxu0 %v858
    %951 = vmatpush.bf16.msra.mxu0 %v854
    %952 = vmatpush.bf16.msra.mxu0 %v850
    %953 = vmatpush.bf16.msra.mxu0 %v846
    %954 = vmatmul.bf16.gmra.mxu0 %v707
    %v955 = vpop.f32.mrf.mxu0
    %v956 = vadd.f32 0.0, %v955
    %v957 = vpop.f32.mrf.mxu0
    %958 = vdwg.mxu0
    %v959 = vadd.f32 %v711, %v917
    %v960 = vadd.f32 %v712, %v930
    %v961 = vadd.f32 %v713, %v943
    %v962 = vadd.f32 %v714, %v956
    %v963 = vxor.u32 %v959, 2147483648
    %v964 = vmul.f32 %v963, 1.442695
    %v965 = vpow.pop %v964
    %v966 = vadd.f32 %v965, 1.0
    %v967 = vrcp.pop %v966
    %v968 = vmul.f32 %v966, %v967
    %v969 = vsub.f32 1.0, %v968
    %v970 = vmul.f32 %v967, %v969
    %v971 = vadd.f32 %v967, %v970
    %vm972 = vweird.f32 %v966
    %vm973 = vweird.f32 %v967
    %vm974 = vmor %vm972, %vm973
    %v975 = vsel %vm974, %v967, %v971
    %v976 = vand.u32 2147483647, %v966
    %vm977 = vcmp.eq.f32.partialorder %v976, 8.507059e+37
    %v978 = vand.u32 %v966, 2147483648
    %v979 = vor.u32 1.1754944e-38, %v978
    %v980 = vsel %vm977, %v979, %v975
    %v981 = vmul.f32 1.0, %v980
    %v982 = vxor.u32 %v960, 2147483648
    %v983 = vmul.f32 %v982, 1.442695
    %v984 = vpow.pop %v983
    %v985 = vadd.f32 %v984, 1.0
    %v986 = vrcp.pop %v985
    %v987 = vmul.f32 %v985, %v986
    %v988 = vsub.f32 1.0, %v987
    %v989 = vmul.f32 %v986, %v988
    %v990 = vadd.f32 %v986, %v989
    %vm991 = vweird.f32 %v985
    %vm992 = vweird.f32 %v986
    %vm993 = vmor %vm991, %vm992
    %v994 = vsel %vm993, %v986, %v990
    %v995 = vand.u32 2147483647, %v985
    %vm996 = vcmp.eq.f32.partialorder %v995, 8.507059e+37
    %v997 = vand.u32 %v985, 2147483648
    %v998 = vor.u32 1.1754944e-38, %v997
    %v999 = vsel %vm996, %v998, %v994
    %v1000 = vmul.f32 1.0, %v999
    %v1001 = vtanh.pop %v961
    %v1002 = vxor.u32 %v962, 2147483648
    %v1003 = vmul.f32 %v1002, 1.442695
    %v1004 = vpow.pop %v1003
    %v1005 = vadd.f32 %v1004, 1.0
    %v1006 = vrcp.pop %v1005
    %v1007 = vmul.f32 %v1005, %v1006
    %v1008 = vsub.f32 1.0, %v1007
    %v1009 = vmul.f32 %v1006, %v1008
    %v1010 = vadd.f32 %v1006, %v1009
    %vm1011 = vweird.f32 %v1005
    %vm1012 = vweird.f32 %v1006
    %vm1013 = vmor %vm1011, %vm1012
    %v1014 = vsel %vm1013, %v1006, %v1010
    %v1015 = vand.u32 2147483647, %v1005
    %vm1016 = vcmp.eq.f32.partialorder %v1015, 8.507059e+37
    %v1017 = vand.u32 %v1005, 2147483648
    %v1018 = vor.u32 1.1754944e-38, %v1017
    %v1019 = vsel %vm1016, %v1018, %v1014
    %v1020 = vmul.f32 1.0, %v1019
    %v1021 = vmul.f32 %v1000, %v704
    %v1022 = vmul.f32 %v981, %v1001
    %v1023 = vadd.f32 %v1021, %v1022
    %v1024 = vtanh.pop %v1023
    %v1025 = vmul.f32 %v1020, %v1024
    %v1026 = vpack.c.bf16 %v1025, %v1025
    %s1027 = scalar_lea.vmem [#allocation4], 8
    %1028 = vst [vmem:[%s1027] sm:$0xf] %v1026
    %s1029 = scalar_lea.vmem [#allocation5], 96
    %v1030 = vld [vmem:[%s1029] sm:$0xff]
    %v1031 = vld [vmem:[%s1029 + $0x8] sm:$0xff]
    %v1032 = vld [vmem:[%s1029 + $0x10] sm:$0xff]
    %v1033 = vld [vmem:[%s1029 + $0x18] sm:$0xff]
    %v1034 = vld [vmem:[#allocation8] sm:$0xff]
    %v1035 = vld [vmem:[#allocation8 + $0x8] sm:$0xff]
    %v1036 = vld [vmem:[#allocation8 + $0x10] sm:$0xff]
    %v1037 = vld [vmem:[#allocation8 + $0x18] sm:$0xff]
    %v1038 = vld [vmem:[#allocation8 + $0x20] sm:$0xff]
    %v1039 = vld [vmem:[#allocation8 + $0x28] sm:$0xff]
    %v1040 = vld [vmem:[#allocation8 + $0x30] sm:$0xff]
    %v1041 = vld [vmem:[#allocation8 + $0x38] sm:$0xff]
    %v1042 = vld [vmem:[#allocation8 + $0x40] sm:$0xff]
    %v1043 = vld [vmem:[#allocation8 + $0x48] sm:$0xff]
    %v1044 = vld [vmem:[#allocation8 + $0x50] sm:$0xff]
    %v1045 = vld [vmem:[#allocation8 + $0x58] sm:$0xff]
    %v1046 = vld [vmem:[#allocation8 + $0x60] sm:$0xff]
    %v1047 = vld [vmem:[#allocation8 + $0x68] sm:$0xff]
    %v1048 = vld [vmem:[#allocation8 + $0x70] sm:$0xff]
    %v1049 = vld [vmem:[#allocation8 + $0x78] sm:$0xff]
    %v1050 = vld [vmem:[#allocation8 + $0x80] sm:$0xff]
    %v1051 = vld [vmem:[#allocation8 + $0x88] sm:$0xff]
    %v1052 = vld [vmem:[#allocation8 + $0x90] sm:$0xff]
    %v1053 = vld [vmem:[#allocation8 + $0x98] sm:$0xff]
    %v1054 = vld [vmem:[#allocation8 + $0xa0] sm:$0xff]
    %v1055 = vld [vmem:[#allocation8 + $0xa8] sm:$0xff]
    %v1056 = vld [vmem:[#allocation8 + $0xb0] sm:$0xff]
    %v1057 = vld [vmem:[#allocation8 + $0xb8] sm:$0xff]
    %v1058 = vld [vmem:[#allocation8 + $0xc0] sm:$0xff]
    %v1059 = vld [vmem:[#allocation8 + $0xc8] sm:$0xff]
    %v1060 = vld [vmem:[#allocation8 + $0xd0] sm:$0xff]
    %v1061 = vld [vmem:[#allocation8 + $0xd8] sm:$0xff]
    %v1062 = vld [vmem:[#allocation8 + $0xe0] sm:$0xff]
    %v1063 = vld [vmem:[#allocation8 + $0xe8] sm:$0xff]
    %v1064 = vld [vmem:[#allocation8 + $0xf0] sm:$0xff]
    %v1065 = vld [vmem:[#allocation8 + $0xf8] sm:$0xff]
    %v1098 = vunpack.c.l.b16 %v1034
    %v1099 = vunpack.c.h.b16 %v1034
    %v1100 = vunpack.c.l.b16 %v1035
    %v1101 = vunpack.c.h.b16 %v1035
    %v1102 = vunpack.c.l.b16 %v1036
    %v1103 = vunpack.c.h.b16 %v1036
    %v1104 = vunpack.c.l.b16 %v1037
    %v1105 = vunpack.c.h.b16 %v1037
    %v1106 = vunpack.c.l.b16 %v1038
    %v1107 = vunpack.c.h.b16 %v1038
    %v1108 = vunpack.c.l.b16 %v1039
    %v1109 = vunpack.c.h.b16 %v1039
    %v1110 = vunpack.c.l.b16 %v1040
    %v1111 = vunpack.c.h.b16 %v1040
    %v1112 = vunpack.c.l.b16 %v1041
    %v1113 = vunpack.c.h.b16 %v1041
    %v1114 = vunpack.c.l.b16 %v1042
    %v1115 = vunpack.c.h.b16 %v1042
    %v1116 = vunpack.c.l.b16 %v1043
    %v1117 = vunpack.c.h.b16 %v1043
    %v1118 = vunpack.c.l.b16 %v1044
    %v1119 = vunpack.c.h.b16 %v1044
    %v1120 = vunpack.c.l.b16 %v1045
    %v1121 = vunpack.c.h.b16 %v1045
    %v1122 = vunpack.c.l.b16 %v1046
    %v1123 = vunpack.c.h.b16 %v1046
    %v1124 = vunpack.c.l.b16 %v1047
    %v1125 = vunpack.c.h.b16 %v1047
    %v1126 = vunpack.c.l.b16 %v1048
    %v1127 = vunpack.c.h.b16 %v1048
    %v1128 = vunpack.c.l.b16 %v1049
    %v1129 = vunpack.c.h.b16 %v1049
    %v1130 = vunpack.c.l.b16 %v1050
    %v1131 = vunpack.c.h.b16 %v1050
    %v1132 = vunpack.c.l.b16 %v1051
    %v1133 = vunpack.c.h.b16 %v1051
    %v1134 = vunpack.c.l.b16 %v1052
    %v1135 = vunpack.c.h.b16 %v1052
    %v1136 = vunpack.c.l.b16 %v1053
    %v1137 = vunpack.c.h.b16 %v1053
    %v1138 = vunpack.c.l.b16 %v1054
    %v1139 = vunpack.c.h.b16 %v1054
    %v1140 = vunpack.c.l.b16 %v1055
    %v1141 = vunpack.c.h.b16 %v1055
    %v1142 = vunpack.c.l.b16 %v1056
    %v1143 = vunpack.c.h.b16 %v1056
    %v1144 = vunpack.c.l.b16 %v1057
    %v1145 = vunpack.c.h.b16 %v1057
    %v1146 = vunpack.c.l.b16 %v1058
    %v1147 = vunpack.c.h.b16 %v1058
    %v1148 = vunpack.c.l.b16 %v1059
    %v1149 = vunpack.c.h.b16 %v1059
    %v1150 = vunpack.c.l.b16 %v1060
    %v1151 = vunpack.c.h.b16 %v1060
    %v1152 = vunpack.c.l.b16 %v1061
    %v1153 = vunpack.c.h.b16 %v1061
    %v1154 = vunpack.c.l.b16 %v1062
    %v1155 = vunpack.c.h.b16 %v1062
    %v1156 = vunpack.c.l.b16 %v1063
    %v1157 = vunpack.c.h.b16 %v1063
    %v1158 = vunpack.c.l.b16 %v1064
    %v1159 = vunpack.c.h.b16 %v1064
    %v1160 = vunpack.c.l.b16 %v1065
    %v1161 = vunpack.c.h.b16 %v1065
    %v1162 = vpack.c.b16 %v1102, %v1098
    %v1163 = vpack.c.b16 %v1103, %v1099
    %v1164 = vpack.c.b16 %v1104, %v1100
    %v1165 = vpack.c.b16 %v1105, %v1101
    %v1166 = vpack.c.b16 %v1110, %v1106
    %v1167 = vpack.c.b16 %v1111, %v1107
    %v1168 = vpack.c.b16 %v1112, %v1108
    %v1169 = vpack.c.b16 %v1113, %v1109
    %v1170 = vpack.c.b16 %v1118, %v1114
    %v1171 = vpack.c.b16 %v1119, %v1115
    %v1172 = vpack.c.b16 %v1120, %v1116
    %v1173 = vpack.c.b16 %v1121, %v1117
    %v1174 = vpack.c.b16 %v1126, %v1122
    %v1175 = vpack.c.b16 %v1127, %v1123
    %v1176 = vpack.c.b16 %v1128, %v1124
    %v1177 = vpack.c.b16 %v1129, %v1125
    %v1178 = vpack.c.b16 %v1134, %v1130
    %v1179 = vpack.c.b16 %v1135, %v1131
    %v1180 = vpack.c.b16 %v1136, %v1132
    %v1181 = vpack.c.b16 %v1137, %v1133
    %v1182 = vpack.c.b16 %v1142, %v1138
    %v1183 = vpack.c.b16 %v1143, %v1139
    %v1184 = vpack.c.b16 %v1144, %v1140
    %v1185 = vpack.c.b16 %v1145, %v1141
    %v1186 = vpack.c.b16 %v1150, %v1146
    %v1187 = vpack.c.b16 %v1151, %v1147
    %v1188 = vpack.c.b16 %v1152, %v1148
    %v1189 = vpack.c.b16 %v1153, %v1149
    %v1190 = vpack.c.b16 %v1158, %v1154
    %v1191 = vpack.c.b16 %v1159, %v1155
    %v1192 = vpack.c.b16 %v1160, %v1156
    %v1193 = vpack.c.b16 %v1161, %v1157
    %1226 = vmatpush.bf16.msra.mxu0 %v1190
    %1227 = vmatpush.bf16.msra.mxu0 %v1186
    %1228 = vmatpush.bf16.msra.mxu0 %v1182
    %1229 = vmatpush.bf16.msra.mxu0 %v1178
    %1230 = vmatpush.bf16.msra.mxu0 %v1174
    %1231 = vmatpush.bf16.msra.mxu0 %v1170
    %1232 = vmatpush.bf16.msra.mxu0 %v1166
    %1233 = vmatpush.bf16.msra.mxu0 %v1162
    %1234 = vmatmul.bf16.gmra.mxu0 %v1026
    %v1235 = vpop.f32.mrf.mxu0
    %v1236 = vadd.f32 0.0, %v1235
    %v1237 = vpop.f32.mrf.mxu0
    %1238 = vdwg.mxu0
    %1239 = vmatpush.bf16.msra.mxu0 %v1191
    %1240 = vmatpush.bf16.msra.mxu0 %v1187
    %1241 = vmatpush.bf16.msra.mxu0 %v1183
    %1242 = vmatpush.bf16.msra.mxu0 %v1179
    %1243 = vmatpush.bf16.msra.mxu0 %v1175
    %1244 = vmatpush.bf16.msra.mxu0 %v1171
    %1245 = vmatpush.bf16.msra.mxu0 %v1167
    %1246 = vmatpush.bf16.msra.mxu0 %v1163
    %1247 = vmatmul.bf16.gmra.mxu0 %v1026
    %v1248 = vpop.f32.mrf.mxu0
    %v1249 = vadd.f32 0.0, %v1248
    %v1250 = vpop.f32.mrf.mxu0
    %1251 = vdwg.mxu0
    %1252 = vmatpush.bf16.msra.mxu0 %v1192
    %1253 = vmatpush.bf16.msra.mxu0 %v1188
    %1254 = vmatpush.bf16.msra.mxu0 %v1184
    %1255 = vmatpush.bf16.msra.mxu0 %v1180
    %1256 = vmatpush.bf16.msra.mxu0 %v1176
    %1257 = vmatpush.bf16.msra.mxu0 %v1172
    %1258 = vmatpush.bf16.msra.mxu0 %v1168
    %1259 = vmatpush.bf16.msra.mxu0 %v1164
    %1260 = vmatmul.bf16.gmra.mxu0 %v1026
    %v1261 = vpop.f32.mrf.mxu0
    %v1262 = vadd.f32 0.0, %v1261
    %v1263 = vpop.f32.mrf.mxu0
    %1264 = vdwg.mxu0
    %1265 = vmatpush.bf16.msra.mxu0 %v1193
    %1266 = vmatpush.bf16.msra.mxu0 %v1189
    %1267 = vmatpush.bf16.msra.mxu0 %v1185
    %1268 = vmatpush.bf16.msra.mxu0 %v1181
    %1269 = vmatpush.bf16.msra.mxu0 %v1177
    %1270 = vmatpush.bf16.msra.mxu0 %v1173
    %1271 = vmatpush.bf16.msra.mxu0 %v1169
    %1272 = vmatpush.bf16.msra.mxu0 %v1165
    %1273 = vmatmul.bf16.gmra.mxu0 %v1026
    %v1274 = vpop.f32.mrf.mxu0
    %v1275 = vadd.f32 0.0, %v1274
    %v1276 = vpop.f32.mrf.mxu0
    %1277 = vdwg.mxu0
    %v1278 = vadd.f32 %v1030, %v1236
    %v1279 = vadd.f32 %v1031, %v1249
    %v1280 = vadd.f32 %v1032, %v1262
    %v1281 = vadd.f32 %v1033, %v1275
    %v1282 = vxor.u32 %v1278, 2147483648
    %v1283 = vmul.f32 %v1282, 1.442695
    %v1284 = vpow.pop %v1283
    %v1285 = vadd.f32 %v1284, 1.0
    %v1286 = vrcp.pop %v1285
    %v1287 = vmul.f32 %v1285, %v1286
    %v1288 = vsub.f32 1.0, %v1287
    %v1289 = vmul.f32 %v1286, %v1288
    %v1290 = vadd.f32 %v1286, %v1289
    %vm1291 = vweird.f32 %v1285
    %vm1292 = vweird.f32 %v1286
    %vm1293 = vmor %vm1291, %vm1292
    %v1294 = vsel %vm1293, %v1286, %v1290
    %v1295 = vand.u32 2147483647, %v1285
    %vm1296 = vcmp.eq.f32.partialorder %v1295, 8.507059e+37
    %v1297 = vand.u32 %v1285, 2147483648
    %v1298 = vor.u32 1.1754944e-38, %v1297
    %v1299 = vsel %vm1296, %v1298, %v1294
    %v1300 = vmul.f32 1.0, %v1299
    %v1301 = vxor.u32 %v1279, 2147483648
    %v1302 = vmul.f32 %v1301, 1.442695
    %v1303 = vpow.pop %v1302
    %v1304 = vadd.f32 %v1303, 1.0
    %v1305 = vrcp.pop %v1304
    %v1306 = vmul.f32 %v1304, %v1305
    %v1307 = vsub.f32 1.0, %v1306
    %v1308 = vmul.f32 %v1305, %v1307
    %v1309 = vadd.f32 %v1305, %v1308
    %vm1310 = vweird.f32 %v1304
    %vm1311 = vweird.f32 %v1305
    %vm1312 = vmor %vm1310, %vm1311
    %v1313 = vsel %vm1312, %v1305, %v1309
    %v1314 = vand.u32 2147483647, %v1304
    %vm1315 = vcmp.eq.f32.partialorder %v1314, 8.507059e+37
    %v1316 = vand.u32 %v1304, 2147483648
    %v1317 = vor.u32 1.1754944e-38, %v1316
    %v1318 = vsel %vm1315, %v1317, %v1313
    %v1319 = vmul.f32 1.0, %v1318
    %v1320 = vtanh.pop %v1280
    %v1321 = vxor.u32 %v1281, 2147483648
    %v1322 = vmul.f32 %v1321, 1.442695
    %v1323 = vpow.pop %v1322
    %v1324 = vadd.f32 %v1323, 1.0
    %v1325 = vrcp.pop %v1324
    %v1326 = vmul.f32 %v1324, %v1325
    %v1327 = vsub.f32 1.0, %v1326
    %v1328 = vmul.f32 %v1325, %v1327
    %v1329 = vadd.f32 %v1325, %v1328
    %vm1330 = vweird.f32 %v1324
    %vm1331 = vweird.f32 %v1325
    %vm1332 = vmor %vm1330, %vm1331
    %v1333 = vsel %vm1332, %v1325, %v1329
    %v1334 = vand.u32 2147483647, %v1324
    %vm1335 = vcmp.eq.f32.partialorder %v1334, 8.507059e+37
    %v1336 = vand.u32 %v1324, 2147483648
    %v1337 = vor.u32 1.1754944e-38, %v1336
    %v1338 = vsel %vm1335, %v1337, %v1333
    %v1339 = vmul.f32 1.0, %v1338
    %v1340 = vmul.f32 %v1319, %v1023
    %v1341 = vmul.f32 %v1300, %v1320
    %v1342 = vadd.f32 %v1340, %v1341
    %v1343 = vtanh.pop %v1342
    %v1344 = vmul.f32 %v1339, %v1343
    %v1345 = vpack.c.bf16 %v1344, %v1344
    %s1346 = scalar_lea.vmem [#allocation4], 12
    %1347 = vst [vmem:[%s1346] sm:$0xf] %v1345
    %s1348 = scalar_lea.vmem [#allocation5], 128
    %v1349 = vld [vmem:[%s1348] sm:$0xff]
    %v1350 = vld [vmem:[%s1348 + $0x8] sm:$0xff]
    %v1351 = vld [vmem:[%s1348 + $0x10] sm:$0xff]
    %v1352 = vld [vmem:[%s1348 + $0x18] sm:$0xff]
    %v1353 = vld [vmem:[#allocation8] sm:$0xff]
    %v1354 = vld [vmem:[#allocation8 + $0x8] sm:$0xff]
    %v1355 = vld [vmem:[#allocation8 + $0x10] sm:$0xff]
    %v1356 = vld [vmem:[#allocation8 + $0x18] sm:$0xff]
    %v1357 = vld [vmem:[#allocation8 + $0x20] sm:$0xff]
    %v1358 = vld [vmem:[#allocation8 + $0x28] sm:$0xff]
    %v1359 = vld [vmem:[#allocation8 + $0x30] sm:$0xff]
    %v1360 = vld [vmem:[#allocation8 + $0x38] sm:$0xff]
    %v1361 = vld [vmem:[#allocation8 + $0x40] sm:$0xff]
    %v1362 = vld [vmem:[#allocation8 + $0x48] sm:$0xff]
    %v1363 = vld [vmem:[#allocation8 + $0x50] sm:$0xff]
    %v1364 = vld [vmem:[#allocation8 + $0x58] sm:$0xff]
    %v1365 = vld [vmem:[#allocation8 + $0x60] sm:$0xff]
    %v1366 = vld [vmem:[#allocation8 + $0x68] sm:$0xff]
    %v1367 = vld [vmem:[#allocation8 + $0x70] sm:$0xff]
    %v1368 = vld [vmem:[#allocation8 + $0x78] sm:$0xff]
    %v1369 = vld [vmem:[#allocation8 + $0x80] sm:$0xff]
    %v1370 = vld [vmem:[#allocation8 + $0x88] sm:$0xff]
    %v1371 = vld [vmem:[#allocation8 + $0x90] sm:$0xff]
    %v1372 = vld [vmem:[#allocation8 + $0x98] sm:$0xff]
    %v1373 = vld [vmem:[#allocation8 + $0xa0] sm:$0xff]
    %v1374 = vld [vmem:[#allocation8 + $0xa8] sm:$0xff]
    %v1375 = vld [vmem:[#allocation8 + $0xb0] sm:$0xff]
    %v1376 = vld [vmem:[#allocation8 + $0xb8] sm:$0xff]
    %v1377 = vld [vmem:[#allocation8 + $0xc0] sm:$0xff]
    %v1378 = vld [vmem:[#allocation8 + $0xc8] sm:$0xff]
    %v1379 = vld [vmem:[#allocation8 + $0xd0] sm:$0xff]
    %v1380 = vld [vmem:[#allocation8 + $0xd8] sm:$0xff]
    %v1381 = vld [vmem:[#allocation8 + $0xe0] sm:$0xff]
    %v1382 = vld [vmem:[#allocation8 + $0xe8] sm:$0xff]
    %v1383 = vld [vmem:[#allocation8 + $0xf0] sm:$0xff]
    %v1384 = vld [vmem:[#allocation8 + $0xf8] sm:$0xff]
    %v1417 = vunpack.c.l.b16 %v1353
    %v1418 = vunpack.c.h.b16 %v1353
    %v1419 = vunpack.c.l.b16 %v1354
    %v1420 = vunpack.c.h.b16 %v1354
    %v1421 = vunpack.c.l.b16 %v1355
    %v1422 = vunpack.c.h.b16 %v1355
    %v1423 = vunpack.c.l.b16 %v1356
    %v1424 = vunpack.c.h.b16 %v1356
    %v1425 = vunpack.c.l.b16 %v1357
    %v1426 = vunpack.c.h.b16 %v1357
    %v1427 = vunpack.c.l.b16 %v1358
    %v1428 = vunpack.c.h.b16 %v1358
    %v1429 = vunpack.c.l.b16 %v1359
    %v1430 = vunpack.c.h.b16 %v1359
    %v1431 = vunpack.c.l.b16 %v1360
    %v1432 = vunpack.c.h.b16 %v1360
    %v1433 = vunpack.c.l.b16 %v1361
    %v1434 = vunpack.c.h.b16 %v1361
    %v1435 = vunpack.c.l.b16 %v1362
    %v1436 = vunpack.c.h.b16 %v1362
    %v1437 = vunpack.c.l.b16 %v1363
    %v1438 = vunpack.c.h.b16 %v1363
    %v1439 = vunpack.c.l.b16 %v1364
    %v1440 = vunpack.c.h.b16 %v1364
    %v1441 = vunpack.c.l.b16 %v1365
    %v1442 = vunpack.c.h.b16 %v1365
    %v1443 = vunpack.c.l.b16 %v1366
    %v1444 = vunpack.c.h.b16 %v1366
    %v1445 = vunpack.c.l.b16 %v1367
    %v1446 = vunpack.c.h.b16 %v1367
    %v1447 = vunpack.c.l.b16 %v1368
    %v1448 = vunpack.c.h.b16 %v1368
    %v1449 = vunpack.c.l.b16 %v1369
    %v1450 = vunpack.c.h.b16 %v1369
    %v1451 = vunpack.c.l.b16 %v1370
    %v1452 = vunpack.c.h.b16 %v1370
    %v1453 = vunpack.c.l.b16 %v1371
    %v1454 = vunpack.c.h.b16 %v1371
    %v1455 = vunpack.c.l.b16 %v1372
    %v1456 = vunpack.c.h.b16 %v1372
    %v1457 = vunpack.c.l.b16 %v1373
    %v1458 = vunpack.c.h.b16 %v1373
    %v1459 = vunpack.c.l.b16 %v1374
    %v1460 = vunpack.c.h.b16 %v1374
    %v1461 = vunpack.c.l.b16 %v1375
    %v1462 = vunpack.c.h.b16 %v1375
    %v1463 = vunpack.c.l.b16 %v1376
    %v1464 = vunpack.c.h.b16 %v1376
    %v1465 = vunpack.c.l.b16 %v1377
    %v1466 = vunpack.c.h.b16 %v1377
    %v1467 = vunpack.c.l.b16 %v1378
    %v1468 = vunpack.c.h.b16 %v1378
    %v1469 = vunpack.c.l.b16 %v1379
    %v1470 = vunpack.c.h.b16 %v1379
    %v1471 = vunpack.c.l.b16 %v1380
    %v1472 = vunpack.c.h.b16 %v1380
    %v1473 = vunpack.c.l.b16 %v1381
    %v1474 = vunpack.c.h.b16 %v1381
    %v1475 = vunpack.c.l.b16 %v1382
    %v1476 = vunpack.c.h.b16 %v1382
    %v1477 = vunpack.c.l.b16 %v1383
    %v1478 = vunpack.c.h.b16 %v1383
    %v1479 = vunpack.c.l.b16 %v1384
    %v1480 = vunpack.c.h.b16 %v1384
    %v1481 = vpack.c.b16 %v1421, %v1417
    %v1482 = vpack.c.b16 %v1422, %v1418
    %v1483 = vpack.c.b16 %v1423, %v1419
    %v1484 = vpack.c.b16 %v1424, %v1420
    %v1485 = vpack.c.b16 %v1429, %v1425
    %v1486 = vpack.c.b16 %v1430, %v1426
    %v1487 = vpack.c.b16 %v1431, %v1427
    %v1488 = vpack.c.b16 %v1432, %v1428
    %v1489 = vpack.c.b16 %v1437, %v1433
    %v1490 = vpack.c.b16 %v1438, %v1434
    %v1491 = vpack.c.b16 %v1439, %v1435
    %v1492 = vpack.c.b16 %v1440, %v1436
    %v1493 = vpack.c.b16 %v1445, %v1441
    %v1494 = vpack.c.b16 %v1446, %v1442
    %v1495 = vpack.c.b16 %v1447, %v1443
    %v1496 = vpack.c.b16 %v1448, %v1444
    %v1497 = vpack.c.b16 %v1453, %v1449
    %v1498 = vpack.c.b16 %v1454, %v1450
    %v1499 = vpack.c.b16 %v1455, %v1451
    %v1500 = vpack.c.b16 %v1456, %v1452
    %v1501 = vpack.c.b16 %v1461, %v1457
    %v1502 = vpack.c.b16 %v1462, %v1458
    %v1503 = vpack.c.b16 %v1463, %v1459
    %v1504 = vpack.c.b16 %v1464, %v1460
    %v1505 = vpack.c.b16 %v1469, %v1465
    %v1506 = vpack.c.b16 %v1470, %v1466
    %v1507 = vpack.c.b16 %v1471, %v1467
    %v1508 = vpack.c.b16 %v1472, %v1468
    %v1509 = vpack.c.b16 %v1477, %v1473
    %v1510 = vpack.c.b16 %v1478, %v1474
    %v1511 = vpack.c.b16 %v1479, %v1475
    %v1512 = vpack.c.b16 %v1480, %v1476
    %1545 = vmatpush.bf16.msra.mxu0 %v1509
    %1546 = vmatpush.bf16.msra.mxu0 %v1505
    %1547 = vmatpush.bf16.msra.mxu0 %v1501
    %1548 = vmatpush.bf16.msra.mxu0 %v1497
    %1549 = vmatpush.bf16.msra.mxu0 %v1493
    %1550 = vmatpush.bf16.msra.mxu0 %v1489
    %1551 = vmatpush.bf16.msra.mxu0 %v1485
    %1552 = vmatpush.bf16.msra.mxu0 %v1481
    %1553 = vmatmul.bf16.gmra.mxu0 %v1345
    %v1554 = vpop.f32.mrf.mxu0
    %v1555 = vadd.f32 0.0, %v1554
    %v1556 = vpop.f32.mrf.mxu0
    %1557 = vdwg.mxu0
    %1558 = vmatpush.bf16.msra.mxu0 %v1510
    %1559 = vmatpush.bf16.msra.mxu0 %v1506
    %1560 = vmatpush.bf16.msra.mxu0 %v1502
    %1561 = vmatpush.bf16.msra.mxu0 %v1498
    %1562 = vmatpush.bf16.msra.mxu0 %v1494
    %1563 = vmatpush.bf16.msra.mxu0 %v1490
    %1564 = vmatpush.bf16.msra.mxu0 %v1486
    %1565 = vmatpush.bf16.msra.mxu0 %v1482
    %1566 = vmatmul.bf16.gmra.mxu0 %v1345
    %v1567 = vpop.f32.mrf.mxu0
    %v1568 = vadd.f32 0.0, %v1567
    %v1569 = vpop.f32.mrf.mxu0
    %1570 = vdwg.mxu0
    %1571 = vmatpush.bf16.msra.mxu0 %v1511
    %1572 = vmatpush.bf16.msra.mxu0 %v1507
    %1573 = vmatpush.bf16.msra.mxu0 %v1503
    %1574 = vmatpush.bf16.msra.mxu0 %v1499
    %1575 = vmatpush.bf16.msra.mxu0 %v1495
    %1576 = vmatpush.bf16.msra.mxu0 %v1491
    %1577 = vmatpush.bf16.msra.mxu0 %v1487
    %1578 = vmatpush.bf16.msra.mxu0 %v1483
    %1579 = vmatmul.bf16.gmra.mxu0 %v1345
    %v1580 = vpop.f32.mrf.mxu0
    %v1581 = vadd.f32 0.0, %v1580
    %v1582 = vpop.f32.mrf.mxu0
    %1583 = vdwg.mxu0
    %1584 = vmatpush.bf16.msra.mxu0 %v1512
    %1585 = vmatpush.bf16.msra.mxu0 %v1508
    %1586 = vmatpush.bf16.msra.mxu0 %v1504
    %1587 = vmatpush.bf16.msra.mxu0 %v1500
    %1588 = vmatpush.bf16.msra.mxu0 %v1496
    %1589 = vmatpush.bf16.msra.mxu0 %v1492
    %1590 = vmatpush.bf16.msra.mxu0 %v1488
    %1591 = vmatpush.bf16.msra.mxu0 %v1484
    %1592 = vmatmul.bf16.gmra.mxu0 %v1345
    %v1593 = vpop.f32.mrf.mxu0
    %v1594 = vadd.f32 0.0, %v1593
    %v1595 = vpop.f32.mrf.mxu0
    %1596 = vdwg.mxu0
    %v1597 = vadd.f32 %v1349, %v1555
    %v1598 = vadd.f32 %v1350, %v1568
    %v1599 = vadd.f32 %v1351, %v1581
    %v1600 = vadd.f32 %v1352, %v1594
    %v1601 = vxor.u32 %v1597, 2147483648
    %v1602 = vmul.f32 %v1601, 1.442695
    %v1603 = vpow.pop %v1602
    %v1604 = vadd.f32 %v1603, 1.0
    %v1605 = vrcp.pop %v1604
    %v1606 = vmul.f32 %v1604, %v1605
    %v1607 = vsub.f32 1.0, %v1606
    %v1608 = vmul.f32 %v1605, %v1607
    %v1609 = vadd.f32 %v1605, %v1608
    %vm1610 = vweird.f32 %v1604
    %vm1611 = vweird.f32 %v1605
    %vm1612 = vmor %vm1610, %vm1611
    %v1613 = vsel %vm1612, %v1605, %v1609
    %v1614 = vand.u32 2147483647, %v1604
    %vm1615 = vcmp.eq.f32.partialorder %v1614, 8.507059e+37
    %v1616 = vand.u32 %v1604, 2147483648
    %v1617 = vor.u32 1.1754944e-38, %v1616
    %v1618 = vsel %vm1615, %v1617, %v1613
    %v1619 = vmul.f32 1.0, %v1618
    %v1620 = vxor.u32 %v1598, 2147483648
    %v1621 = vmul.f32 %v1620, 1.442695
    %v1622 = vpow.pop %v1621
    %v1623 = vadd.f32 %v1622, 1.0
    %v1624 = vrcp.pop %v1623
    %v1625 = vmul.f32 %v1623, %v1624
    %v1626 = vsub.f32 1.0, %v1625
    %v1627 = vmul.f32 %v1624, %v1626
    %v1628 = vadd.f32 %v1624, %v1627
    %vm1629 = vweird.f32 %v1623
    %vm1630 = vweird.f32 %v1624
    %vm1631 = vmor %vm1629, %vm1630
    %v1632 = vsel %vm1631, %v1624, %v1628
    %v1633 = vand.u32 2147483647, %v1623
    %vm1634 = vcmp.eq.f32.partialorder %v1633, 8.507059e+37
    %v1635 = vand.u32 %v1623, 2147483648
    %v1636 = vor.u32 1.1754944e-38, %v1635
    %v1637 = vsel %vm1634, %v1636, %v1632
    %v1638 = vmul.f32 1.0, %v1637
    %v1639 = vtanh.pop %v1599
    %v1640 = vxor.u32 %v1600, 2147483648
    %v1641 = vmul.f32 %v1640, 1.442695
    %v1642 = vpow.pop %v1641
    %v1643 = vadd.f32 %v1642, 1.0
    %v1644 = vrcp.pop %v1643
    %v1645 = vmul.f32 %v1643, %v1644
    %v1646 = vsub.f32 1.0, %v1645
    %v1647 = vmul.f32 %v1644, %v1646
    %v1648 = vadd.f32 %v1644, %v1647
    %vm1649 = vweird.f32 %v1643
    %vm1650 = vweird.f32 %v1644
    %vm1651 = vmor %vm1649, %vm1650
    %v1652 = vsel %vm1651, %v1644, %v1648
    %v1653 = vand.u32 2147483647, %v1643
    %vm1654 = vcmp.eq.f32.partialorder %v1653, 8.507059e+37
    %v1655 = vand.u32 %v1643, 2147483648
    %v1656 = vor.u32 1.1754944e-38, %v1655
    %v1657 = vsel %vm1654, %v1656, %v1652
    %v1658 = vmul.f32 1.0, %v1657
    %v1659 = vmul.f32 %v1638, %v1342
    %v1660 = vmul.f32 %v1619, %v1639
    %v1661 = vadd.f32 %v1659, %v1660
    %v1662 = vtanh.pop %v1661
    %v1663 = vmul.f32 %v1658, %v1662
    %v1664 = vpack.c.bf16 %v1663, %v1663
    %s1665 = scalar_lea.vmem [#allocation4], 16
    %1666 = vst [vmem:[%s1665] sm:$0xf] %v1664
    %s1667 = scalar_lea.vmem [#allocation5], 160
    %v1668 = vld [vmem:[%s1667] sm:$0xff]
    %v1669 = vld [vmem:[%s1667 + $0x8] sm:$0xff]
    %v1670 = vld [vmem:[%s1667 + $0x10] sm:$0xff]
    %v1671 = vld [vmem:[%s1667 + $0x18] sm:$0xff]
    %v1672 = vld [vmem:[#allocation8] sm:$0xff]
    %v1673 = vld [vmem:[#allocation8 + $0x8] sm:$0xff]
    %v1674 = vld [vmem:[#allocation8 + $0x10] sm:$0xff]
    %v1675 = vld [vmem:[#allocation8 + $0x18] sm:$0xff]
    %v1676 = vld [vmem:[#allocation8 + $0x20] sm:$0xff]
    %v1677 = vld [vmem:[#allocation8 + $0x28] sm:$0xff]
    %v1678 = vld [vmem:[#allocation8 + $0x30] sm:$0xff]
    %v1679 = vld [vmem:[#allocation8 + $0x38] sm:$0xff]
    %v1680 = vld [vmem:[#allocation8 + $0x40] sm:$0xff]
    %v1681 = vld [vmem:[#allocation8 + $0x48] sm:$0xff]
    %v1682 = vld [vmem:[#allocation8 + $0x50] sm:$0xff]
    %v1683 = vld [vmem:[#allocation8 + $0x58] sm:$0xff]
    %v1684 = vld [vmem:[#allocation8 + $0x60] sm:$0xff]
    %v1685 = vld [vmem:[#allocation8 + $0x68] sm:$0xff]
    %v1686 = vld [vmem:[#allocation8 + $0x70] sm:$0xff]
    %v1687 = vld [vmem:[#allocation8 + $0x78] sm:$0xff]
    %v1688 = vld [vmem:[#allocation8 + $0x80] sm:$0xff]
    %v1689 = vld [vmem:[#allocation8 + $0x88] sm:$0xff]
    %v1690 = vld [vmem:[#allocation8 + $0x90] sm:$0xff]
    %v1691 = vld [vmem:[#allocation8 + $0x98] sm:$0xff]
    %v1692 = vld [vmem:[#allocation8 + $0xa0] sm:$0xff]
    %v1693 = vld [vmem:[#allocation8 + $0xa8] sm:$0xff]
    %v1694 = vld [vmem:[#allocation8 + $0xb0] sm:$0xff]
    %v1695 = vld [vmem:[#allocation8 + $0xb8] sm:$0xff]
    %v1696 = vld [vmem:[#allocation8 + $0xc0] sm:$0xff]
    %v1697 = vld [vmem:[#allocation8 + $0xc8] sm:$0xff]
    %v1698 = vld [vmem:[#allocation8 + $0xd0] sm:$0xff]
    %v1699 = vld [vmem:[#allocation8 + $0xd8] sm:$0xff]
    %v1700 = vld [vmem:[#allocation8 + $0xe0] sm:$0xff]
    %v1701 = vld [vmem:[#allocation8 + $0xe8] sm:$0xff]
    %v1702 = vld [vmem:[#allocation8 + $0xf0] sm:$0xff]
    %v1703 = vld [vmem:[#allocation8 + $0xf8] sm:$0xff]
    %v1736 = vunpack.c.l.b16 %v1672
    %v1737 = vunpack.c.h.b16 %v1672
    %v1738 = vunpack.c.l.b16 %v1673
    %v1739 = vunpack.c.h.b16 %v1673
    %v1740 = vunpack.c.l.b16 %v1674
    %v1741 = vunpack.c.h.b16 %v1674
    %v1742 = vunpack.c.l.b16 %v1675
    %v1743 = vunpack.c.h.b16 %v1675
    %v1744 = vunpack.c.l.b16 %v1676
    %v1745 = vunpack.c.h.b16 %v1676
    %v1746 = vunpack.c.l.b16 %v1677
    %v1747 = vunpack.c.h.b16 %v1677
    %v1748 = vunpack.c.l.b16 %v1678
    %v1749 = vunpack.c.h.b16 %v1678
    %v1750 = vunpack.c.l.b16 %v1679
    %v1751 = vunpack.c.h.b16 %v1679
    %v1752 = vunpack.c.l.b16 %v1680
    %v1753 = vunpack.c.h.b16 %v1680
    %v1754 = vunpack.c.l.b16 %v1681
    %v1755 = vunpack.c.h.b16 %v1681
    %v1756 = vunpack.c.l.b16 %v1682
    %v1757 = vunpack.c.h.b16 %v1682
    %v1758 = vunpack.c.l.b16 %v1683
    %v1759 = vunpack.c.h.b16 %v1683
    %v1760 = vunpack.c.l.b16 %v1684
    %v1761 = vunpack.c.h.b16 %v1684
    %v1762 = vunpack.c.l.b16 %v1685
    %v1763 = vunpack.c.h.b16 %v1685
    %v1764 = vunpack.c.l.b16 %v1686
    %v1765 = vunpack.c.h.b16 %v1686
    %v1766 = vunpack.c.l.b16 %v1687
    %v1767 = vunpack.c.h.b16 %v1687
    %v1768 = vunpack.c.l.b16 %v1688
    %v1769 = vunpack.c.h.b16 %v1688
    %v1770 = vunpack.c.l.b16 %v1689
    %v1771 = vunpack.c.h.b16 %v1689
    %v1772 = vunpack.c.l.b16 %v1690
    %v1773 = vunpack.c.h.b16 %v1690
    %v1774 = vunpack.c.l.b16 %v1691
    %v1775 = vunpack.c.h.b16 %v1691
    %v1776 = vunpack.c.l.b16 %v1692
    %v1777 = vunpack.c.h.b16 %v1692
    %v1778 = vunpack.c.l.b16 %v1693
    %v1779 = vunpack.c.h.b16 %v1693
    %v1780 = vunpack.c.l.b16 %v1694
    %v1781 = vunpack.c.h.b16 %v1694
    %v1782 = vunpack.c.l.b16 %v1695
    %v1783 = vunpack.c.h.b16 %v1695
    %v1784 = vunpack.c.l.b16 %v1696
    %v1785 = vunpack.c.h.b16 %v1696
    %v1786 = vunpack.c.l.b16 %v1697
    %v1787 = vunpack.c.h.b16 %v1697
    %v1788 = vunpack.c.l.b16 %v1698
    %v1789 = vunpack.c.h.b16 %v1698
    %v1790 = vunpack.c.l.b16 %v1699
    %v1791 = vunpack.c.h.b16 %v1699
    %v1792 = vunpack.c.l.b16 %v1700
    %v1793 = vunpack.c.h.b16 %v1700
    %v1794 = vunpack.c.l.b16 %v1701
    %v1795 = vunpack.c.h.b16 %v1701
    %v1796 = vunpack.c.l.b16 %v1702
    %v1797 = vunpack.c.h.b16 %v1702
    %v1798 = vunpack.c.l.b16 %v1703
    %v1799 = vunpack.c.h.b16 %v1703
    %v1800 = vpack.c.b16 %v1740, %v1736
    %v1801 = vpack.c.b16 %v1741, %v1737
    %v1802 = vpack.c.b16 %v1742, %v1738
    %v1803 = vpack.c.b16 %v1743, %v1739
    %v1804 = vpack.c.b16 %v1748, %v1744
    %v1805 = vpack.c.b16 %v1749, %v1745
    %v1806 = vpack.c.b16 %v1750, %v1746
    %v1807 = vpack.c.b16 %v1751, %v1747
    %v1808 = vpack.c.b16 %v1756, %v1752
    %v1809 = vpack.c.b16 %v1757, %v1753
    %v1810 = vpack.c.b16 %v1758, %v1754
    %v1811 = vpack.c.b16 %v1759, %v1755
    %v1812 = vpack.c.b16 %v1764, %v1760
    %v1813 = vpack.c.b16 %v1765, %v1761
    %v1814 = vpack.c.b16 %v1766, %v1762
    %v1815 = vpack.c.b16 %v1767, %v1763
    %v1816 = vpack.c.b16 %v1772, %v1768
    %v1817 = vpack.c.b16 %v1773, %v1769
    %v1818 = vpack.c.b16 %v1774, %v1770
    %v1819 = vpack.c.b16 %v1775, %v1771
    %v1820 = vpack.c.b16 %v1780, %v1776
    %v1821 = vpack.c.b16 %v1781, %v1777
    %v1822 = vpack.c.b16 %v1782, %v1778
    %v1823 = vpack.c.b16 %v1783, %v1779
    %v1824 = vpack.c.b16 %v1788, %v1784
    %v1825 = vpack.c.b16 %v1789, %v1785
    %v1826 = vpack.c.b16 %v1790, %v1786
    %v1827 = vpack.c.b16 %v1791, %v1787
    %v1828 = vpack.c.b16 %v1796, %v1792
    %v1829 = vpack.c.b16 %v1797, %v1793
    %v1830 = vpack.c.b16 %v1798, %v1794
    %v1831 = vpack.c.b16 %v1799, %v1795
    %1864 = vmatpush.bf16.msra.mxu0 %v1828
    %1865 = vmatpush.bf16.msra.mxu0 %v1824
    %1866 = vmatpush.bf16.msra.mxu0 %v1820
    %1867 = vmatpush.bf16.msra.mxu0 %v1816
    %1868 = vmatpush.bf16.msra.mxu0 %v1812
    %1869 = vmatpush.bf16.msra.mxu0 %v1808
    %1870 = vmatpush.bf16.msra.mxu0 %v1804
    %1871 = vmatpush.bf16.msra.mxu0 %v1800
    %1872 = vmatmul.bf16.gmra.mxu0 %v1664
    %v1873 = vpop.f32.mrf.mxu0
    %v1874 = vadd.f32 0.0, %v1873
    %v1875 = vpop.f32.mrf.mxu0
    %1876 = vdwg.mxu0
    %1877 = vmatpush.bf16.msra.mxu0 %v1829
    %1878 = vmatpush.bf16.msra.mxu0 %v1825
    %1879 = vmatpush.bf16.msra.mxu0 %v1821
    %1880 = vmatpush.bf16.msra.mxu0 %v1817
    %1881 = vmatpush.bf16.msra.mxu0 %v1813
    %1882 = vmatpush.bf16.msra.mxu0 %v1809
    %1883 = vmatpush.bf16.msra.mxu0 %v1805
    %1884 = vmatpush.bf16.msra.mxu0 %v1801
    %1885 = vmatmul.bf16.gmra.mxu0 %v1664
    %v1886 = vpop.f32.mrf.mxu0
    %v1887 = vadd.f32 0.0, %v1886
    %v1888 = vpop.f32.mrf.mxu0
    %1889 = vdwg.mxu0
    %1890 = vmatpush.bf16.msra.mxu0 %v1830
    %1891 = vmatpush.bf16.msra.mxu0 %v1826
    %1892 = vmatpush.bf16.msra.mxu0 %v1822
    %1893 = vmatpush.bf16.msra.mxu0 %v1818
    %1894 = vmatpush.bf16.msra.mxu0 %v1814
    %1895 = vmatpush.bf16.msra.mxu0 %v1810
    %1896 = vmatpush.bf16.msra.mxu0 %v1806
    %1897 = vmatpush.bf16.msra.mxu0 %v1802
    %1898 = vmatmul.bf16.gmra.mxu0 %v1664
    %v1899 = vpop.f32.mrf.mxu0
    %v1900 = vadd.f32 0.0, %v1899
    %v1901 = vpop.f32.mrf.mxu0
    %1902 = vdwg.mxu0
    %1903 = vmatpush.bf16.msra.mxu0 %v1831
    %1904 = vmatpush.bf16.msra.mxu0 %v1827
    %1905 = vmatpush.bf16.msra.mxu0 %v1823
    %1906 = vmatpush.bf16.msra.mxu0 %v1819
    %1907 = vmatpush.bf16.msra.mxu0 %v1815
    %1908 = vmatpush.bf16.msra.mxu0 %v1811
    %1909 = vmatpush.bf16.msra.mxu0 %v1807
    %1910 = vmatpush.bf16.msra.mxu0 %v1803
    %1911 = vmatmul.bf16.gmra.mxu0 %v1664
    %v1912 = vpop.f32.mrf.mxu0
    %v1913 = vadd.f32 0.0, %v1912
    %v1914 = vpop.f32.mrf.mxu0
    %1915 = vdwg.mxu0
    %v1916 = vadd.f32 %v1668, %v1874
    %v1917 = vadd.f32 %v1669, %v1887
    %v1918 = vadd.f32 %v1670, %v1900
    %v1919 = vadd.f32 %v1671, %v1913
    %v1920 = vxor.u32 %v1916, 2147483648
    %v1921 = vmul.f32 %v1920, 1.442695
    %v1922 = vpow.pop %v1921
    %v1923 = vadd.f32 %v1922, 1.0
    %v1924 = vrcp.pop %v1923
    %v1925 = vmul.f32 %v1923, %v1924
    %v1926 = vsub.f32 1.0, %v1925
    %v1927 = vmul.f32 %v1924, %v1926
    %v1928 = vadd.f32 %v1924, %v1927
    %vm1929 = vweird.f32 %v1923
    %vm1930 = vweird.f32 %v1924
    %vm1931 = vmor %vm1929, %vm1930
    %v1932 = vsel %vm1931, %v1924, %v1928
    %v1933 = vand.u32 2147483647, %v1923
    %vm1934 = vcmp.eq.f32.partialorder %v1933, 8.507059e+37
    %v1935 = vand.u32 %v1923, 2147483648
    %v1936 = vor.u32 1.1754944e-38, %v1935
    %v1937 = vsel %vm1934, %v1936, %v1932
    %v1938 = vmul.f32 1.0, %v1937
    %v1939 = vxor.u32 %v1917, 2147483648
    %v1940 = vmul.f32 %v1939, 1.442695
    %v1941 = vpow.pop %v1940
    %v1942 = vadd.f32 %v1941, 1.0
    %v1943 = vrcp.pop %v1942
    %v1944 = vmul.f32 %v1942, %v1943
    %v1945 = vsub.f32 1.0, %v1944
    %v1946 = vmul.f32 %v1943, %v1945
    %v1947 = vadd.f32 %v1943, %v1946
    %vm1948 = vweird.f32 %v1942
    %vm1949 = vweird.f32 %v1943
    %vm1950 = vmor %vm1948, %vm1949
    %v1951 = vsel %vm1950, %v1943, %v1947
    %v1952 = vand.u32 2147483647, %v1942
    %vm1953 = vcmp.eq.f32.partialorder %v1952, 8.507059e+37
    %v1954 = vand.u32 %v1942, 2147483648
    %v1955 = vor.u32 1.1754944e-38, %v1954
    %v1956 = vsel %vm1953, %v1955, %v1951
    %v1957 = vmul.f32 1.0, %v1956
    %v1958 = vtanh.pop %v1918
    %v1959 = vxor.u32 %v1919, 2147483648
    %v1960 = vmul.f32 %v1959, 1.442695
    %v1961 = vpow.pop %v1960
    %v1962 = vadd.f32 %v1961, 1.0
    %v1963 = vrcp.pop %v1962
    %v1964 = vmul.f32 %v1962, %v1963
    %v1965 = vsub.f32 1.0, %v1964
    %v1966 = vmul.f32 %v1963, %v1965
    %v1967 = vadd.f32 %v1963, %v1966
    %vm1968 = vweird.f32 %v1962
    %vm1969 = vweird.f32 %v1963
    %vm1970 = vmor %vm1968, %vm1969
    %v1971 = vsel %vm1970, %v1963, %v1967
    %v1972 = vand.u32 2147483647, %v1962
    %vm1973 = vcmp.eq.f32.partialorder %v1972, 8.507059e+37
    %v1974 = vand.u32 %v1962, 2147483648
    %v1975 = vor.u32 1.1754944e-38, %v1974
    %v1976 = vsel %vm1973, %v1975, %v1971
    %v1977 = vmul.f32 1.0, %v1976
    %v1978 = vmul.f32 %v1957, %v1661
    %v1979 = vmul.f32 %v1938, %v1958
    %v1980 = vadd.f32 %v1978, %v1979
    %v1981 = vtanh.pop %v1980
    %v1982 = vmul.f32 %v1977, %v1981
    %v1983 = vpack.c.bf16 %v1982, %v1982
    %s1984 = scalar_lea.vmem [#allocation4], 20
    %1985 = vst [vmem:[%s1984] sm:$0xf] %v1983
    %s1986 = scalar_lea.vmem [#allocation5], 192
    %v1987 = vld [vmem:[%s1986] sm:$0xff]
    %v1988 = vld [vmem:[%s1986 + $0x8] sm:$0xff]
    %v1989 = vld [vmem:[%s1986 + $0x10] sm:$0xff]
    %v1990 = vld [vmem:[%s1986 + $0x18] sm:$0xff]
    %v1991 = vld [vmem:[#allocation8] sm:$0xff]
    %v1992 = vld [vmem:[#allocation8 + $0x8] sm:$0xff]
    %v1993 = vld [vmem:[#allocation8 + $0x10] sm:$0xff]
    %v1994 = vld [vmem:[#allocation8 + $0x18] sm:$0xff]
    %v1995 = vld [vmem:[#allocation8 + $0x20] sm:$0xff]
    %v1996 = vld [vmem:[#allocation8 + $0x28] sm:$0xff]
    %v1997 = vld [vmem:[#allocation8 + $0x30] sm:$0xff]
    %v1998 = vld [vmem:[#allocation8 + $0x38] sm:$0xff]
    %v1999 = vld [vmem:[#allocation8 + $0x40] sm:$0xff]
    %v2000 = vld [vmem:[#allocation8 + $0x48] sm:$0xff]
    %v2001 = vld [vmem:[#allocation8 + $0x50] sm:$0xff]
    %v2002 = vld [vmem:[#allocation8 + $0x58] sm:$0xff]
    %v2003 = vld [vmem:[#allocation8 + $0x60] sm:$0xff]
    %v2004 = vld [vmem:[#allocation8 + $0x68] sm:$0xff]
    %v2005 = vld [vmem:[#allocation8 + $0x70] sm:$0xff]
    %v2006 = vld [vmem:[#allocation8 + $0x78] sm:$0xff]
    %v2007 = vld [vmem:[#allocation8 + $0x80] sm:$0xff]
    %v2008 = vld [vmem:[#allocation8 + $0x88] sm:$0xff]
    %v2009 = vld [vmem:[#allocation8 + $0x90] sm:$0xff]
    %v2010 = vld [vmem:[#allocation8 + $0x98] sm:$0xff]
    %v2011 = vld [vmem:[#allocation8 + $0xa0] sm:$0xff]
    %v2012 = vld [vmem:[#allocation8 + $0xa8] sm:$0xff]
    %v2013 = vld [vmem:[#allocation8 + $0xb0] sm:$0xff]
    %v2014 = vld [vmem:[#allocation8 + $0xb8] sm:$0xff]
    %v2015 = vld [vmem:[#allocation8 + $0xc0] sm:$0xff]
    %v2016 = vld [vmem:[#allocation8 + $0xc8] sm:$0xff]
    %v2017 = vld [vmem:[#allocation8 + $0xd0] sm:$0xff]
    %v2018 = vld [vmem:[#allocation8 + $0xd8] sm:$0xff]
    %v2019 = vld [vmem:[#allocation8 + $0xe0] sm:$0xff]
    %v2020 = vld [vmem:[#allocation8 + $0xe8] sm:$0xff]
    %v2021 = vld [vmem:[#allocation8 + $0xf0] sm:$0xff]
    %v2022 = vld [vmem:[#allocation8 + $0xf8] sm:$0xff]
    %v2055 = vunpack.c.l.b16 %v1991
    %v2056 = vunpack.c.h.b16 %v1991
    %v2057 = vunpack.c.l.b16 %v1992
    %v2058 = vunpack.c.h.b16 %v1992
    %v2059 = vunpack.c.l.b16 %v1993
    %v2060 = vunpack.c.h.b16 %v1993
    %v2061 = vunpack.c.l.b16 %v1994
    %v2062 = vunpack.c.h.b16 %v1994
    %v2063 = vunpack.c.l.b16 %v1995
    %v2064 = vunpack.c.h.b16 %v1995
    %v2065 = vunpack.c.l.b16 %v1996
    %v2066 = vunpack.c.h.b16 %v1996
    %v2067 = vunpack.c.l.b16 %v1997
    %v2068 = vunpack.c.h.b16 %v1997
    %v2069 = vunpack.c.l.b16 %v1998
    %v2070 = vunpack.c.h.b16 %v1998
    %v2071 = vunpack.c.l.b16 %v1999
    %v2072 = vunpack.c.h.b16 %v1999
    %v2073 = vunpack.c.l.b16 %v2000
    %v2074 = vunpack.c.h.b16 %v2000
    %v2075 = vunpack.c.l.b16 %v2001
    %v2076 = vunpack.c.h.b16 %v2001
    %v2077 = vunpack.c.l.b16 %v2002
    %v2078 = vunpack.c.h.b16 %v2002
    %v2079 = vunpack.c.l.b16 %v2003
    %v2080 = vunpack.c.h.b16 %v2003
    %v2081 = vunpack.c.l.b16 %v2004
    %v2082 = vunpack.c.h.b16 %v2004
    %v2083 = vunpack.c.l.b16 %v2005
    %v2084 = vunpack.c.h.b16 %v2005
    %v2085 = vunpack.c.l.b16 %v2006
    %v2086 = vunpack.c.h.b16 %v2006
    %v2087 = vunpack.c.l.b16 %v2007
    %v2088 = vunpack.c.h.b16 %v2007
    %v2089 = vunpack.c.l.b16 %v2008
    %v2090 = vunpack.c.h.b16 %v2008
    %v2091 = vunpack.c.l.b16 %v2009
    %v2092 = vunpack.c.h.b16 %v2009
    %v2093 = vunpack.c.l.b16 %v2010
    %v2094 = vunpack.c.h.b16 %v2010
    %v2095 = vunpack.c.l.b16 %v2011
    %v2096 = vunpack.c.h.b16 %v2011
    %v2097 = vunpack.c.l.b16 %v2012
    %v2098 = vunpack.c.h.b16 %v2012
    %v2099 = vunpack.c.l.b16 %v2013
    %v2100 = vunpack.c.h.b16 %v2013
    %v2101 = vunpack.c.l.b16 %v2014
    %v2102 = vunpack.c.h.b16 %v2014
    %v2103 = vunpack.c.l.b16 %v2015
    %v2104 = vunpack.c.h.b16 %v2015
    %v2105 = vunpack.c.l.b16 %v2016
    %v2106 = vunpack.c.h.b16 %v2016
    %v2107 = vunpack.c.l.b16 %v2017
    %v2108 = vunpack.c.h.b16 %v2017
    %v2109 = vunpack.c.l.b16 %v2018
    %v2110 = vunpack.c.h.b16 %v2018
    %v2111 = vunpack.c.l.b16 %v2019
    %v2112 = vunpack.c.h.b16 %v2019
    %v2113 = vunpack.c.l.b16 %v2020
    %v2114 = vunpack.c.h.b16 %v2020
    %v2115 = vunpack.c.l.b16 %v2021
    %v2116 = vunpack.c.h.b16 %v2021
    %v2117 = vunpack.c.l.b16 %v2022
    %v2118 = vunpack.c.h.b16 %v2022
    %v2119 = vpack.c.b16 %v2059, %v2055
    %v2120 = vpack.c.b16 %v2060, %v2056
    %v2121 = vpack.c.b16 %v2061, %v2057
    %v2122 = vpack.c.b16 %v2062, %v2058
    %v2123 = vpack.c.b16 %v2067, %v2063
    %v2124 = vpack.c.b16 %v2068, %v2064
    %v2125 = vpack.c.b16 %v2069, %v2065
    %v2126 = vpack.c.b16 %v2070, %v2066
    %v2127 = vpack.c.b16 %v2075, %v2071
    %v2128 = vpack.c.b16 %v2076, %v2072
    %v2129 = vpack.c.b16 %v2077, %v2073
    %v2130 = vpack.c.b16 %v2078, %v2074
    %v2131 = vpack.c.b16 %v2083, %v2079
    %v2132 = vpack.c.b16 %v2084, %v2080
    %v2133 = vpack.c.b16 %v2085, %v2081
    %v2134 = vpack.c.b16 %v2086, %v2082
    %v2135 = vpack.c.b16 %v2091, %v2087
    %v2136 = vpack.c.b16 %v2092, %v2088
    %v2137 = vpack.c.b16 %v2093, %v2089
    %v2138 = vpack.c.b16 %v2094, %v2090
    %v2139 = vpack.c.b16 %v2099, %v2095
    %v2140 = vpack.c.b16 %v2100, %v2096
    %v2141 = vpack.c.b16 %v2101, %v2097
    %v2142 = vpack.c.b16 %v2102, %v2098
    %v2143 = vpack.c.b16 %v2107, %v2103
    %v2144 = vpack.c.b16 %v2108, %v2104
    %v2145 = vpack.c.b16 %v2109, %v2105
    %v2146 = vpack.c.b16 %v2110, %v2106
    %v2147 = vpack.c.b16 %v2115, %v2111
    %v2148 = vpack.c.b16 %v2116, %v2112
    %v2149 = vpack.c.b16 %v2117, %v2113
    %v2150 = vpack.c.b16 %v2118, %v2114
    %2183 = vmatpush.bf16.msra.mxu0 %v2147
    %2184 = vmatpush.bf16.msra.mxu0 %v2143
    %2185 = vmatpush.bf16.msra.mxu0 %v2139
    %2186 = vmatpush.bf16.msra.mxu0 %v2135
    %2187 = vmatpush.bf16.msra.mxu0 %v2131
    %2188 = vmatpush.bf16.msra.mxu0 %v2127
    %2189 = vmatpush.bf16.msra.mxu0 %v2123
    %2190 = vmatpush.bf16.msra.mxu0 %v2119
    %2191 = vmatmul.bf16.gmra.mxu0 %v1983
    %v2192 = vpop.f32.mrf.mxu0
    %v2193 = vadd.f32 0.0, %v2192
    %v2194 = vpop.f32.mrf.mxu0
    %2195 = vdwg.mxu0
    %2196 = vmatpush.bf16.msra.mxu0 %v2148
    %2197 = vmatpush.bf16.msra.mxu0 %v2144
    %2198 = vmatpush.bf16.msra.mxu0 %v2140
    %2199 = vmatpush.bf16.msra.mxu0 %v2136
    %2200 = vmatpush.bf16.msra.mxu0 %v2132
    %2201 = vmatpush.bf16.msra.mxu0 %v2128
    %2202 = vmatpush.bf16.msra.mxu0 %v2124
    %2203 = vmatpush.bf16.msra.mxu0 %v2120
    %2204 = vmatmul.bf16.gmra.mxu0 %v1983
    %v2205 = vpop.f32.mrf.mxu0
    %v2206 = vadd.f32 0.0, %v2205
    %v2207 = vpop.f32.mrf.mxu0
    %2208 = vdwg.mxu0
    %2209 = vmatpush.bf16.msra.mxu0 %v2149
    %2210 = vmatpush.bf16.msra.mxu0 %v2145
    %2211 = vmatpush.bf16.msra.mxu0 %v2141
    %2212 = vmatpush.bf16.msra.mxu0 %v2137
    %2213 = vmatpush.bf16.msra.mxu0 %v2133
    %2214 = vmatpush.bf16.msra.mxu0 %v2129
    %2215 = vmatpush.bf16.msra.mxu0 %v2125
    %2216 = vmatpush.bf16.msra.mxu0 %v2121
    %2217 = vmatmul.bf16.gmra.mxu0 %v1983
    %v2218 = vpop.f32.mrf.mxu0
    %v2219 = vadd.f32 0.0, %v2218
    %v2220 = vpop.f32.mrf.mxu0
    %2221 = vdwg.mxu0
    %2222 = vmatpush.bf16.msra.mxu0 %v2150
    %2223 = vmatpush.bf16.msra.mxu0 %v2146
    %2224 = vmatpush.bf16.msra.mxu0 %v2142
    %2225 = vmatpush.bf16.msra.mxu0 %v2138
    %2226 = vmatpush.bf16.msra.mxu0 %v2134
    %2227 = vmatpush.bf16.msra.mxu0 %v2130
    %2228 = vmatpush.bf16.msra.mxu0 %v2126
    %2229 = vmatpush.bf16.msra.mxu0 %v2122
    %2230 = vmatmul.bf16.gmra.mxu0 %v1983
    %v2231 = vpop.f32.mrf.mxu0
    %v2232 = vadd.f32 0.0, %v2231
    %v2233 = vpop.f32.mrf.mxu0
    %2234 = vdwg.mxu0
    %v2235 = vadd.f32 %v1987, %v2193
    %v2236 = vadd.f32 %v1988, %v2206
    %v2237 = vadd.f32 %v1989, %v2219
    %v2238 = vadd.f32 %v1990, %v2232
    %v2239 = vxor.u32 %v2235, 2147483648
    %v2240 = vmul.f32 %v2239, 1.442695
    %v2241 = vpow.pop %v2240
    %v2242 = vadd.f32 %v2241, 1.0
    %v2243 = vrcp.pop %v2242
    %v2244 = vmul.f32 %v2242, %v2243
    %v2245 = vsub.f32 1.0, %v2244
    %v2246 = vmul.f32 %v2243, %v2245
    %v2247 = vadd.f32 %v2243, %v2246
    %vm2248 = vweird.f32 %v2242
    %vm2249 = vweird.f32 %v2243
    %vm2250 = vmor %vm2248, %vm2249
    %v2251 = vsel %vm2250, %v2243, %v2247
    %v2252 = vand.u32 2147483647, %v2242
    %vm2253 = vcmp.eq.f32.partialorder %v2252, 8.507059e+37
    %v2254 = vand.u32 %v2242, 2147483648
    %v2255 = vor.u32 1.1754944e-38, %v2254
    %v2256 = vsel %vm2253, %v2255, %v2251
    %v2257 = vmul.f32 1.0, %v2256
    %v2258 = vxor.u32 %v2236, 2147483648
    %v2259 = vmul.f32 %v2258, 1.442695
    %v2260 = vpow.pop %v2259
    %v2261 = vadd.f32 %v2260, 1.0
    %v2262 = vrcp.pop %v2261
    %v2263 = vmul.f32 %v2261, %v2262
    %v2264 = vsub.f32 1.0, %v2263
    %v2265 = vmul.f32 %v2262, %v2264
    %v2266 = vadd.f32 %v2262, %v2265
    %vm2267 = vweird.f32 %v2261
    %vm2268 = vweird.f32 %v2262
    %vm2269 = vmor %vm2267, %vm2268
    %v2270 = vsel %vm2269, %v2262, %v2266
    %v2271 = vand.u32 2147483647, %v2261
    %vm2272 = vcmp.eq.f32.partialorder %v2271, 8.507059e+37
    %v2273 = vand.u32 %v2261, 2147483648
    %v2274 = vor.u32 1.1754944e-38, %v2273
    %v2275 = vsel %vm2272, %v2274, %v2270
    %v2276 = vmul.f32 1.0, %v2275
    %v2277 = vtanh.pop %v2237
    %v2278 = vxor.u32 %v2238, 2147483648
    %v2279 = vmul.f32 %v2278, 1.442695
    %v2280 = vpow.pop %v2279
    %v2281 = vadd.f32 %v2280, 1.0
    %v2282 = vrcp.pop %v2281
    %v2283 = vmul.f32 %v2281, %v2282
    %v2284 = vsub.f32 1.0, %v2283
    %v2285 = vmul.f32 %v2282, %v2284
    %v2286 = vadd.f32 %v2282, %v2285
    %vm2287 = vweird.f32 %v2281
    %vm2288 = vweird.f32 %v2282
    %vm2289 = vmor %vm2287, %vm2288
    %v2290 = vsel %vm2289, %v2282, %v2286
    %v2291 = vand.u32 2147483647, %v2281
    %vm2292 = vcmp.eq.f32.partialorder %v2291, 8.507059e+37
    %v2293 = vand.u32 %v2281, 2147483648
    %v2294 = vor.u32 1.1754944e-38, %v2293
    %v2295 = vsel %vm2292, %v2294, %v2290
    %v2296 = vmul.f32 1.0, %v2295
    %v2297 = vmul.f32 %v2276, %v1980
    %v2298 = vmul.f32 %v2257, %v2277
    %v2299 = vadd.f32 %v2297, %v2298
    %v2300 = vtanh.pop %v2299
    %v2301 = vmul.f32 %v2296, %v2300
    %v2302 = vpack.c.bf16 %v2301, %v2301
    %s2303 = scalar_lea.vmem [#allocation4], 24
    %2304 = vst [vmem:[%s2303] sm:$0xf] %v2302
    %s2305 = scalar_lea.vmem [#allocation5], 224
    %v2306 = vld [vmem:[%s2305] sm:$0xff]
    %v2307 = vld [vmem:[%s2305 + $0x8] sm:$0xff]
    %v2308 = vld [vmem:[%s2305 + $0x10] sm:$0xff]
    %v2309 = vld [vmem:[%s2305 + $0x18] sm:$0xff]
    %v2310 = vld [vmem:[#allocation8] sm:$0xff]
    %v2311 = vld [vmem:[#allocation8 + $0x8] sm:$0xff]
    %v2312 = vld [vmem:[#allocation8 + $0x10] sm:$0xff]
    %v2313 = vld [vmem:[#allocation8 + $0x18] sm:$0xff]
    %v2314 = vld [vmem:[#allocation8 + $0x20] sm:$0xff]
    %v2315 = vld [vmem:[#allocation8 + $0x28] sm:$0xff]
    %v2316 = vld [vmem:[#allocation8 + $0x30] sm:$0xff]
    %v2317 = vld [vmem:[#allocation8 + $0x38] sm:$0xff]
    %v2318 = vld [vmem:[#allocation8 + $0x40] sm:$0xff]
    %v2319 = vld [vmem:[#allocation8 + $0x48] sm:$0xff]
    %v2320 = vld [vmem:[#allocation8 + $0x50] sm:$0xff]
    %v2321 = vld [vmem:[#allocation8 + $0x58] sm:$0xff]
    %v2322 = vld [vmem:[#allocation8 + $0x60] sm:$0xff]
    %v2323 = vld [vmem:[#allocation8 + $0x68] sm:$0xff]
    %v2324 = vld [vmem:[#allocation8 + $0x70] sm:$0xff]
    %v2325 = vld [vmem:[#allocation8 + $0x78] sm:$0xff]
    %v2326 = vld [vmem:[#allocation8 + $0x80] sm:$0xff]
    %v2327 = vld [vmem:[#allocation8 + $0x88] sm:$0xff]
    %v2328 = vld [vmem:[#allocation8 + $0x90] sm:$0xff]
    %v2329 = vld [vmem:[#allocation8 + $0x98] sm:$0xff]
    %v2330 = vld [vmem:[#allocation8 + $0xa0] sm:$0xff]
    %v2331 = vld [vmem:[#allocation8 + $0xa8] sm:$0xff]
    %v2332 = vld [vmem:[#allocation8 + $0xb0] sm:$0xff]
    %v2333 = vld [vmem:[#allocation8 + $0xb8] sm:$0xff]
    %v2334 = vld [vmem:[#allocation8 + $0xc0] sm:$0xff]
    %v2335 = vld [vmem:[#allocation8 + $0xc8] sm:$0xff]
    %v2336 = vld [vmem:[#allocation8 + $0xd0] sm:$0xff]
    %v2337 = vld [vmem:[#allocation8 + $0xd8] sm:$0xff]
    %v2338 = vld [vmem:[#allocation8 + $0xe0] sm:$0xff]
    %v2339 = vld [vmem:[#allocation8 + $0xe8] sm:$0xff]
    %v2340 = vld [vmem:[#allocation8 + $0xf0] sm:$0xff]
    %v2341 = vld [vmem:[#allocation8 + $0xf8] sm:$0xff]
    %v2374 = vunpack.c.l.b16 %v2310
    %v2375 = vunpack.c.h.b16 %v2310
    %v2376 = vunpack.c.l.b16 %v2311
    %v2377 = vunpack.c.h.b16 %v2311
    %v2378 = vunpack.c.l.b16 %v2312
    %v2379 = vunpack.c.h.b16 %v2312
    %v2380 = vunpack.c.l.b16 %v2313
    %v2381 = vunpack.c.h.b16 %v2313
    %v2382 = vunpack.c.l.b16 %v2314
    %v2383 = vunpack.c.h.b16 %v2314
    %v2384 = vunpack.c.l.b16 %v2315
    %v2385 = vunpack.c.h.b16 %v2315
    %v2386 = vunpack.c.l.b16 %v2316
    %v2387 = vunpack.c.h.b16 %v2316
    %v2388 = vunpack.c.l.b16 %v2317
    %v2389 = vunpack.c.h.b16 %v2317
    %v2390 = vunpack.c.l.b16 %v2318
    %v2391 = vunpack.c.h.b16 %v2318
    %v2392 = vunpack.c.l.b16 %v2319
    %v2393 = vunpack.c.h.b16 %v2319
    %v2394 = vunpack.c.l.b16 %v2320
    %v2395 = vunpack.c.h.b16 %v2320
    %v2396 = vunpack.c.l.b16 %v2321
    %v2397 = vunpack.c.h.b16 %v2321
    %v2398 = vunpack.c.l.b16 %v2322
    %v2399 = vunpack.c.h.b16 %v2322
    %v2400 = vunpack.c.l.b16 %v2323
    %v2401 = vunpack.c.h.b16 %v2323
    %v2402 = vunpack.c.l.b16 %v2324
    %v2403 = vunpack.c.h.b16 %v2324
    %v2404 = vunpack.c.l.b16 %v2325
    %v2405 = vunpack.c.h.b16 %v2325
    %v2406 = vunpack.c.l.b16 %v2326
    %v2407 = vunpack.c.h.b16 %v2326
    %v2408 = vunpack.c.l.b16 %v2327
    %v2409 = vunpack.c.h.b16 %v2327
    %v2410 = vunpack.c.l.b16 %v2328
    %v2411 = vunpack.c.h.b16 %v2328
    %v2412 = vunpack.c.l.b16 %v2329
    %v2413 = vunpack.c.h.b16 %v2329
    %v2414 = vunpack.c.l.b16 %v2330
    %v2415 = vunpack.c.h.b16 %v2330
    %v2416 = vunpack.c.l.b16 %v2331
    %v2417 = vunpack.c.h.b16 %v2331
    %v2418 = vunpack.c.l.b16 %v2332
    %v2419 = vunpack.c.h.b16 %v2332
    %v2420 = vunpack.c.l.b16 %v2333
    %v2421 = vunpack.c.h.b16 %v2333
    %v2422 = vunpack.c.l.b16 %v2334
    %v2423 = vunpack.c.h.b16 %v2334
    %v2424 = vunpack.c.l.b16 %v2335
    %v2425 = vunpack.c.h.b16 %v2335
    %v2426 = vunpack.c.l.b16 %v2336
    %v2427 = vunpack.c.h.b16 %v2336
    %v2428 = vunpack.c.l.b16 %v2337
    %v2429 = vunpack.c.h.b16 %v2337
    %v2430 = vunpack.c.l.b16 %v2338
    %v2431 = vunpack.c.h.b16 %v2338
    %v2432 = vunpack.c.l.b16 %v2339
    %v2433 = vunpack.c.h.b16 %v2339
    %v2434 = vunpack.c.l.b16 %v2340
    %v2435 = vunpack.c.h.b16 %v2340
    %v2436 = vunpack.c.l.b16 %v2341
    %v2437 = vunpack.c.h.b16 %v2341
    %v2438 = vpack.c.b16 %v2378, %v2374
    %v2439 = vpack.c.b16 %v2379, %v2375
    %v2440 = vpack.c.b16 %v2380, %v2376
    %v2441 = vpack.c.b16 %v2381, %v2377
    %v2442 = vpack.c.b16 %v2386, %v2382
    %v2443 = vpack.c.b16 %v2387, %v2383
    %v2444 = vpack.c.b16 %v2388, %v2384
    %v2445 = vpack.c.b16 %v2389, %v2385
    %v2446 = vpack.c.b16 %v2394, %v2390
    %v2447 = vpack.c.b16 %v2395, %v2391
    %v2448 = vpack.c.b16 %v2396, %v2392
    %v2449 = vpack.c.b16 %v2397, %v2393
    %v2450 = vpack.c.b16 %v2402, %v2398
    %v2451 = vpack.c.b16 %v2403, %v2399
    %v2452 = vpack.c.b16 %v2404, %v2400
    %v2453 = vpack.c.b16 %v2405, %v2401
    %v2454 = vpack.c.b16 %v2410, %v2406
    %v2455 = vpack.c.b16 %v2411, %v2407
    %v2456 = vpack.c.b16 %v2412, %v2408
    %v2457 = vpack.c.b16 %v2413, %v2409
    %v2458 = vpack.c.b16 %v2418, %v2414
    %v2459 = vpack.c.b16 %v2419, %v2415
    %v2460 = vpack.c.b16 %v2420, %v2416
    %v2461 = vpack.c.b16 %v2421, %v2417
    %v2462 = vpack.c.b16 %v2426, %v2422
    %v2463 = vpack.c.b16 %v2427, %v2423
    %v2464 = vpack.c.b16 %v2428, %v2424
    %v2465 = vpack.c.b16 %v2429, %v2425
    %v2466 = vpack.c.b16 %v2434, %v2430
    %v2467 = vpack.c.b16 %v2435, %v2431
    %v2468 = vpack.c.b16 %v2436, %v2432
    %v2469 = vpack.c.b16 %v2437, %v2433
    %2502 = vmatpush.bf16.msra.mxu0 %v2466
    %2503 = vmatpush.bf16.msra.mxu0 %v2462
    %2504 = vmatpush.bf16.msra.mxu0 %v2458
    %2505 = vmatpush.bf16.msra.mxu0 %v2454
    %2506 = vmatpush.bf16.msra.mxu0 %v2450
    %2507 = vmatpush.bf16.msra.mxu0 %v2446
    %2508 = vmatpush.bf16.msra.mxu0 %v2442
    %2509 = vmatpush.bf16.msra.mxu0 %v2438
    %2510 = vmatmul.bf16.gmra.mxu0 %v2302
    %v2511 = vpop.f32.mrf.mxu0
    %v2512 = vadd.f32 0.0, %v2511
    %v2513 = vpop.f32.mrf.mxu0
    %2514 = vdwg.mxu0
    %2515 = vmatpush.bf16.msra.mxu0 %v2467
    %2516 = vmatpush.bf16.msra.mxu0 %v2463
    %2517 = vmatpush.bf16.msra.mxu0 %v2459
    %2518 = vmatpush.bf16.msra.mxu0 %v2455
    %2519 = vmatpush.bf16.msra.mxu0 %v2451
    %2520 = vmatpush.bf16.msra.mxu0 %v2447
    %2521 = vmatpush.bf16.msra.mxu0 %v2443
    %2522 = vmatpush.bf16.msra.mxu0 %v2439
    %2523 = vmatmul.bf16.gmra.mxu0 %v2302
    %v2524 = vpop.f32.mrf.mxu0
    %v2525 = vadd.f32 0.0, %v2524
    %v2526 = vpop.f32.mrf.mxu0
    %2527 = vdwg.mxu0
    %2528 = vmatpush.bf16.msra.mxu0 %v2468
    %2529 = vmatpush.bf16.msra.mxu0 %v2464
    %2530 = vmatpush.bf16.msra.mxu0 %v2460
    %2531 = vmatpush.bf16.msra.mxu0 %v2456
    %2532 = vmatpush.bf16.msra.mxu0 %v2452
    %2533 = vmatpush.bf16.msra.mxu0 %v2448
    %2534 = vmatpush.bf16.msra.mxu0 %v2444
    %2535 = vmatpush.bf16.msra.mxu0 %v2440
    %2536 = vmatmul.bf16.gmra.mxu0 %v2302
    %v2537 = vpop.f32.mrf.mxu0
    %v2538 = vadd.f32 0.0, %v2537
    %v2539 = vpop.f32.mrf.mxu0
    %2540 = vdwg.mxu0
    %2541 = vmatpush.bf16.msra.mxu0 %v2469
    %2542 = vmatpush.bf16.msra.mxu0 %v2465
    %2543 = vmatpush.bf16.msra.mxu0 %v2461
    %2544 = vmatpush.bf16.msra.mxu0 %v2457
    %2545 = vmatpush.bf16.msra.mxu0 %v2453
    %2546 = vmatpush.bf16.msra.mxu0 %v2449
    %2547 = vmatpush.bf16.msra.mxu0 %v2445
    %2548 = vmatpush.bf16.msra.mxu0 %v2441
    %2549 = vmatmul.bf16.gmra.mxu0 %v2302
    %v2550 = vpop.f32.mrf.mxu0
    %v2551 = vadd.f32 0.0, %v2550
    %v2552 = vpop.f32.mrf.mxu0
    %2553 = vdwg.mxu0
    %v2554 = vadd.f32 %v2306, %v2512
    %v2555 = vadd.f32 %v2307, %v2525
    %v2556 = vadd.f32 %v2308, %v2538
    %v2557 = vadd.f32 %v2309, %v2551
    %v2558 = vxor.u32 %v2554, 2147483648
    %v2559 = vmul.f32 %v2558, 1.442695
    %v2560 = vpow.pop %v2559
    %v2561 = vadd.f32 %v2560, 1.0
    %v2562 = vrcp.pop %v2561
    %v2563 = vmul.f32 %v2561, %v2562
    %v2564 = vsub.f32 1.0, %v2563
    %v2565 = vmul.f32 %v2562, %v2564
    %v2566 = vadd.f32 %v2562, %v2565
    %vm2567 = vweird.f32 %v2561
    %vm2568 = vweird.f32 %v2562
    %vm2569 = vmor %vm2567, %vm2568
    %v2570 = vsel %vm2569, %v2562, %v2566
    %v2571 = vand.u32 2147483647, %v2561
    %vm2572 = vcmp.eq.f32.partialorder %v2571, 8.507059e+37
    %v2573 = vand.u32 %v2561, 2147483648
    %v2574 = vor.u32 1.1754944e-38, %v2573
    %v2575 = vsel %vm2572, %v2574, %v2570
    %v2576 = vmul.f32 1.0, %v2575
    %v2577 = vxor.u32 %v2555, 2147483648
    %v2578 = vmul.f32 %v2577, 1.442695
    %v2579 = vpow.pop %v2578
    %v2580 = vadd.f32 %v2579, 1.0
    %v2581 = vrcp.pop %v2580
    %v2582 = vmul.f32 %v2580, %v2581
    %v2583 = vsub.f32 1.0, %v2582
    %v2584 = vmul.f32 %v2581, %v2583
    %v2585 = vadd.f32 %v2581, %v2584
    %vm2586 = vweird.f32 %v2580
    %vm2587 = vweird.f32 %v2581
    %vm2588 = vmor %vm2586, %vm2587
    %v2589 = vsel %vm2588, %v2581, %v2585
    %v2590 = vand.u32 2147483647, %v2580
    %vm2591 = vcmp.eq.f32.partialorder %v2590, 8.507059e+37
    %v2592 = vand.u32 %v2580, 2147483648
    %v2593 = vor.u32 1.1754944e-38, %v2592
    %v2594 = vsel %vm2591, %v2593, %v2589
    %v2595 = vmul.f32 1.0, %v2594
    %v2596 = vtanh.pop %v2556
    %v2597 = vxor.u32 %v2557, 2147483648
    %v2598 = vmul.f32 %v2597, 1.442695
    %v2599 = vpow.pop %v2598
    %v2600 = vadd.f32 %v2599, 1.0
    %v2601 = vrcp.pop %v2600
    %v2602 = vmul.f32 %v2600, %v2601
    %v2603 = vsub.f32 1.0, %v2602
    %v2604 = vmul.f32 %v2601, %v2603
    %v2605 = vadd.f32 %v2601, %v2604
    %vm2606 = vweird.f32 %v2600
    %vm2607 = vweird.f32 %v2601
    %vm2608 = vmor %vm2606, %vm2607
    %v2609 = vsel %vm2608, %v2601, %v2605
    %v2610 = vand.u32 2147483647, %v2600
    %vm2611 = vcmp.eq.f32.partialorder %v2610, 8.507059e+37
    %v2612 = vand.u32 %v2600, 2147483648
    %v2613 = vor.u32 1.1754944e-38, %v2612
    %v2614 = vsel %vm2611, %v2613, %v2609
    %v2615 = vmul.f32 1.0, %v2614
    %v2616 = vmul.f32 %v2595, %v2299
    %v2617 = vmul.f32 %v2576, %v2596
    %v2618 = vadd.f32 %v2616, %v2617
    %v2619 = vtanh.pop %v2618
    %v2620 = vmul.f32 %v2615, %v2619
    %v2621 = vpack.c.bf16 %v2620, %v2620
    %s2622 = scalar_lea.vmem [#allocation4], 28
    %2623 = vst [vmem:[%s2622] sm:$0xf] %v2621
    %2624 = vst [vmem:[#allocation2] sm:$0xff] %v2620
    %2625 = vst [vmem:[#allocation3] sm:$0xff] %v2618
    %v2626 = vld [vmem:[#allocation4] sm:$0xf]
    %v2627 = vld [vmem:[#allocation4 + $0x4] sm:$0xf]
    %v2628 = vld [vmem:[#allocation4 + $0x8] sm:$0xf]
    %v2629 = vld [vmem:[#allocation4 + $0xc] sm:$0xf]
    %v2630 = vld [vmem:[#allocation4 + $0x10] sm:$0xf]
    %v2631 = vld [vmem:[#allocation4 + $0x14] sm:$0xf]
    %v2632 = vld [vmem:[#allocation4 + $0x18] sm:$0xf]
    %v2633 = vld [vmem:[#allocation4 + $0x1c] sm:$0xf]
    %v2634 = vld [vmem:[#allocation10] sm:$0xf]
    %v2635 = vld [vmem:[#allocation10 + $0x4] sm:$0xf]
    %v2636 = vld [vmem:[#allocation10 + $0x8] sm:$0xf]
    %v2637 = vld [vmem:[#allocation10 + $0xc] sm:$0xf]
    %v2638 = vld [vmem:[#allocation10 + $0x10] sm:$0xf]
    %v2639 = vld [vmem:[#allocation10 + $0x14] sm:$0xf]
    %v2640 = vld [vmem:[#allocation10 + $0x18] sm:$0xf]
    %v2641 = vld [vmem:[#allocation10 + $0x1c] sm:$0xf]
    %v2642 = vld [vmem:[#allocation10 + $0x20] sm:$0xf]
    %v2643 = vld [vmem:[#allocation10 + $0x24] sm:$0xf]
    %v2644 = vld [vmem:[#allocation10 + $0x28] sm:$0xf]
    %v2645 = vld [vmem:[#allocation10 + $0x2c] sm:$0xf]
    %v2646 = vld [vmem:[#allocation10 + $0x30] sm:$0xf]
    %v2647 = vld [vmem:[#allocation10 + $0x34] sm:$0xf]
    %v2648 = vld [vmem:[#allocation10 + $0x38] sm:$0xf]
    %v2649 = vld [vmem:[#allocation10 + $0x3c] sm:$0xf]
    %v2650 = vld [vmem:[%s3] sm:$0x1]
    %v2652 = vperm.slane %v2650, 0
    %v2662 = vunpack.c.l.b16 %v2626
    %v2663 = vunpack.c.l.b16 %v2627
    %v2664 = vunpack.c.l.b16 %v2628
    %v2665 = vunpack.c.l.b16 %v2629
    %v2666 = vunpack.c.l.b16 %v2630
    %v2667 = vunpack.c.l.b16 %v2631
    %v2668 = vunpack.c.l.b16 %v2632
    %v2669 = vunpack.c.l.b16 %v2633
    %v2670 = vpack.c.b16 %v2663, %v2662
    %v2671 = vpack.c.b16 %v2665, %v2664
    %v2672 = vpack.c.b16 %v2667, %v2666
    %v2673 = vpack.c.b16 %v2669, %v2668
    %v2694 = vunpack.c.l.b16 %v2634
    %v2695 = vunpack.c.l.b16 %v2635
    %v2696 = vunpack.c.l.b16 %v2636
    %v2697 = vunpack.c.l.b16 %v2637
    %v2698 = vunpack.c.l.b16 %v2638
    %v2699 = vunpack.c.l.b16 %v2639
    %v2700 = vunpack.c.l.b16 %v2640
    %v2701 = vunpack.c.l.b16 %v2641
    %v2702 = vunpack.c.l.b16 %v2642
    %v2703 = vunpack.c.l.b16 %v2643
    %v2704 = vunpack.c.l.b16 %v2644
    %v2705 = vunpack.c.l.b16 %v2645
    %v2706 = vunpack.c.l.b16 %v2646
    %v2707 = vunpack.c.l.b16 %v2647
    %v2708 = vunpack.c.l.b16 %v2648
    %v2709 = vunpack.c.l.b16 %v2649
    %v2710 = vpack.c.b16 %v2695, %v2694
    %v2711 = vpack.c.b16 %v2697, %v2696
    %v2712 = vpack.c.b16 %v2699, %v2698
    %v2713 = vpack.c.b16 %v2701, %v2700
    %v2714 = vpack.c.b16 %v2703, %v2702
    %v2715 = vpack.c.b16 %v2705, %v2704
    %v2716 = vpack.c.b16 %v2707, %v2706
    %v2717 = vpack.c.b16 %v2709, %v2708
    %2726 = vmatpush.bf16.msra.mxu0 %v2717
    %2727 = vmatpush.bf16.msra.mxu0 %v2716
    %2728 = vmatpush.bf16.msra.mxu0 %v2715
    %2729 = vmatpush.bf16.msra.mxu0 %v2714
    %2730 = vmatpush.bf16.msra.mxu0 %v2713
    %2731 = vmatpush.bf16.msra.mxu0 %v2712
    %2732 = vmatpush.bf16.msra.mxu0 %v2711
    %2733 = vmatpush.bf16.msra.mxu0 %v2710
    %2734 = vmatmul.bf16.gmra.mxu0 %v2670
    %v2735 = vpop.f32.mrf.mxu0
    %v2736 = vadd.f32 %v2652, %v2735
    %v2737 = vpop.f32.mrf.mxu0
    %v2738 = vadd.f32 %v2652, %v2737
    %2739 = vmatmul.bf16.gmra.mxu0 %v2671
    %v2740 = vpop.f32.mrf.mxu0
    %v2741 = vadd.f32 %v2652, %v2740
    %v2742 = vpop.f32.mrf.mxu0
    %v2743 = vadd.f32 %v2652, %v2742
    %2744 = vmatmul.bf16.gmra.mxu0 %v2672
    %v2745 = vpop.f32.mrf.mxu0
    %v2746 = vadd.f32 %v2652, %v2745
    %v2747 = vpop.f32.mrf.mxu0
    %v2748 = vadd.f32 %v2652, %v2747
    %2749 = vmatmul.bf16.gmra.mxu0 %v2673
    %v2750 = vpop.f32.mrf.mxu0
    %v2751 = vadd.f32 %v2652, %v2750
    %v2752 = vpop.f32.mrf.mxu0
    %v2753 = vadd.f32 %v2652, %v2752
    %2754 = vdwg.mxu0
    %2755 = vst [vmem:[#allocation11] sm:$0xff] %v2736
    %2756 = vst [vmem:[#allocation11 + $0x8] sm:$0xff] %v2738
    %2757 = vst [vmem:[#allocation11 + $0x10] sm:$0xff] %v2741
    %2758 = vst [vmem:[#allocation11 + $0x18] sm:$0xff] %v2743
    %2759 = vst [vmem:[#allocation11 + $0x20] sm:$0xff] %v2746
    %2760 = vst [vmem:[#allocation11 + $0x28] sm:$0xff] %v2748
    %2761 = vst [vmem:[#allocation11 + $0x30] sm:$0xff] %v2751
    %2762 = vst [vmem:[#allocation11 + $0x38] sm:$0xff] %v2753
    // Predicated region
    $region34: #{tpu_custom_call.1} parent=1 // pred_check
      _
    $region35: #{tpu_custom_call.1} parent=1 // pred_check_branch
      %2764 = sbr.rel (0) target = $region37
    $region36: #{tpu_custom_call.1} parent=1 // pred_region
      %2766 = vsyncadd [#allocation7], 0
      %s2767 = sshll.u32 [#allocation11], 4
      %s2768 = int_to_ptr.vmem [resolvable:$true] %s2767
      %s2769 = sshll.u32 %s4, 4
      %s2770 = int_to_ptr.hbm [resolvable:$true] %s2769
      %2775 = dma.vmem_to_hbm [thread:$0]  %s2768, 1024, %s2770, [#allocation7], 128, 128, 8
    $region37: #{tpu_custom_call.1} parent=1 // pred_fallthru
      _
    // Predicated region
    $region38: #{tpu_custom_call.1} parent=1 // pred_check
      _
    $region39: #{tpu_custom_call.1} parent=1 // pred_check_branch
      %2777 = sbr.rel (0) target = $region41
    $region40: #{tpu_custom_call.1} parent=1 // pred_region
      %2779 = dma.done [#allocation7], 1024
    $region41: #{tpu_custom_call.1} parent=1 // pred_fallthru
      _
    %2780 = vsyncpa [#allocation6], 1
    %2781 = vsyncpa [#allocation9], 1
    %2782 = vsyncpa [#allocation7], 1

</llo_original>
